<compile_context>
chip_gen: v7x
topology: tpu7x:2x2x1
jax: 0.10.0
libtpu: 0.0.40
codegen_flags: <defaults>
</compile_context>

<pallas_src>
import jax
import jax.numpy as jnp
from jax.experimental import pallas as pl
from jax.experimental.pallas import tpu as pltpu


C_IN = 3          # image channels (no padding needed in channel-major layout)
C_BB = 8          # backbone feature channels
C_NECK = 16       # neck feature channels
D_DEPTH = 4       # depth bins
P_PLANES = 2      # BEV planes ("p" axis)
D_HEAD = 1        # head output channels


# ---------------------------------------------------------------------------
# Fused kernel: backbone + neck(+depth) + encoder fusion + per-plane proj + head
# ---------------------------------------------------------------------------
def _fused_kernel(alpha_ref,                  # SMEM (b, n)   camera weights
                  img_ref,                    # (1, n, C_IN, tm)
                  wbb_ref, bbb_ref,           # (C_BB, C_IN), (C_BB, 1)   Normalize folded in
                  wnk_ref, bnk_ref,           # (C_NECK, C_BB), (C_NECK, 1)
                  wdp_ref, bdp_ref,           # (D_DEPTH, C_BB), (D_DEPTH, 1)
                  wpr_ref, bpr_ref,           # (P, C_NECK, C_NECK), (P, C_NECK, 1)
                  whd_ref, bhd_ref,           # (D_HEAD, C_NECK), (D_HEAD, 1)
                  bev_ref,                    # out (1, D_HEAD, tm)
                  depth_ref):                 # out (1, n, D_DEPTH, tm)
    bidx = pl.program_id(0)
    n_cam = img_ref.shape[1]
    c_in = img_ref.shape[2]
    tm = img_ref.shape[-1]
    c_neck = wnk_ref.shape[0]
    d_depth = wdp_ref.shape[0]

    fused = jnp.zeros((c_neck, tm), jnp.float32)
    for k in range(n_cam):                                        # static, small
        x = img_ref[0, k]                                         # (C_IN, tm)

        # backbone 1x1 conv + ReLU (Normalize folded into weights).  K=3 is cheaper
        # as an unrolled VPU outer-product sum than a 3-deep MXU contraction.
        f0 = wbb_ref[:, 0:1] * x[0:1, :]                          # (C_BB, tm)
        for ci in range(1, c_in):
            f0 = f0 + wbb_ref[:, ci:ci + 1] * x[ci:ci + 1, :]
        f0 = jnp.maximum(f0 + bbb_ref[...], 0.0)

        # neck feature conv + ReLU  (C_NECK, C_BB) @ (C_BB, tm) on the MXU
        f1 = jnp.maximum(
            jnp.dot(wnk_ref[...], f0, preferred_element_type=jnp.float32)
            + bnk_ref[...], 0.0)                                  # (C_NECK, tm)

        # depth head: conv + softmax over depth bins.  Bins live on sublanes, so the
        # softmax is an unrolled elementwise max/exp/sum on the VPU (no lane reduce).
        d = (jnp.dot(wdp_ref[...], f0, preferred_element_type=jnp.float32)
             + bdp_ref[...])                                      # (D_DEPTH, tm)
        m = d[0:1]
        for i in range(1, d_depth):
            m = jnp.maximum(m, d[i:i + 1])
        e = jnp.exp(d - m)
        s = e[0:1]
        for i in range(1, d_depth):
            s = s + e[i:i + 1]
        depth_ref[0, k] = e / s

        # encoder: camera-weighted fusion (weight read from SMEM scalar table)
        fused = fused + alpha_ref[bidx, k] * f1

    # per-plane projection + head 1x1 conv, fused with the .sum over p
    acc = jnp.zeros((whd_ref.shape[0], tm), jnp.float32)
    for p in range(wpr_ref.shape[0]):                             # static, small
        xp = (jnp.dot(wpr_ref[p], fused, preferred_element_type=jnp.float32)
              + bpr_ref[p])                                       # (C_NECK, tm)
        acc = acc + (jnp.dot(whd_ref[...], xp, preferred_element_type=jnp.float32)
                     + bhd_ref[...])
    bev_ref[0] = acc


# ---------------------------------------------------------------------------
# Pallas wrapper
# ---------------------------------------------------------------------------
def _pick_tile(hw):
    # Largest lane-aligned tile that divides HW (no dropped tail rows); fall back to
    # a single full-HW block (block dim == full array dim is always layout-legal).
    for t in (1024, 512, 256, 128):
        if hw % t == 0:
            return t
    return hw


def fused_bev_call(alpha, img, p):
    # alpha: (b, n)  img: (b, n, C_IN, HW)  p: dict of channel-major weights/biases
    b, n, c, hw = img.shape
    tm = _pick_tile(hw)
    grid = (b, hw // tm)

    bev, depth = pl.pallas_call(
        _fused_kernel,
        out_shape=(
            jax.ShapeDtypeStruct((b, D_HEAD, hw), jnp.float32),
            jax.ShapeDtypeStruct((b, n, D_DEPTH, hw), jnp.float32),
        ),
        grid=grid,
        in_specs=[
            pl.BlockSpec(memory_space=pltpu.MemorySpace.SMEM),               # alpha
            pl.BlockSpec((1, n, c, tm), lambda i, t: (i, 0, 0, t)),          # image
            pl.BlockSpec((C_BB, c), lambda i, t: (0, 0)),                    # w_bb'
            pl.BlockSpec((C_BB, 1), lambda i, t: (0, 0)),                    # b_bb'
            pl.BlockSpec((C_NECK, C_BB), lambda i, t: (0, 0)),               # w_neck
            pl.BlockSpec((C_NECK, 1), lambda i, t: (0, 0)),                  # b_neck
            pl.BlockSpec((D_DEPTH, C_BB), lambda i, t: (0, 0)),              # w_depth
            pl.BlockSpec((D_DEPTH, 1), lambda i, t: (0, 0)),                 # b_depth
            pl.BlockSpec((P_PLANES, C_NECK, C_NECK), lambda i, t: (0, 0, 0)),# w_proj
            pl.BlockSpec((P_PLANES, C_NECK, 1), lambda i, t: (0, 0, 0)),     # b_proj
            pl.BlockSpec((D_HEAD, C_NECK), lambda i, t: (0, 0)),             # w_head
            pl.BlockSpec((D_HEAD, 1), lambda i, t: (0, 0)),                  # b_head
        ],
        out_specs=(
            pl.BlockSpec((1, D_HEAD, tm), lambda i, t: (i, 0, t)),
            pl.BlockSpec((1, n, D_DEPTH, tm), lambda i, t: (i, 0, 0, t)),
        ),
        compiler_params=pltpu.CompilerParams(
            dimension_semantics=("parallel", "parallel")),   # no grid-carried acc -> safe
    )(alpha, img,
      p["w_bb_f"], p["b_bb_f"],
      p["w_neck"], p["b_neck"],
      p["w_depth"], p["b_depth"],
      p["w_proj"], p["b_proj"],
      p["w_head"], p["b_head"])
    return bev, depth


# ---------------------------------------------------------------------------
# Model (parameters + forward)
# ---------------------------------------------------------------------------
def init_params(key):
    ks = jax.random.split(key, 7)
    s = 0.1
    return dict(
        # Normalize() — ImageNet stats (folded into backbone weights in forward)
        mean=jnp.array([0.485, 0.456, 0.406], jnp.float32),
        istd=1.0 / jnp.array([0.229, 0.224, 0.225], jnp.float32),
        # channel-major (out, in) weights
        w_bb=s * jax.random.normal(ks[0], (C_BB, C_IN), jnp.float32),
        b_bb=s * jax.random.normal(ks[1], (C_BB,), jnp.float32),
        w_neck=s * jax.random.normal(ks[2], (C_NECK, C_BB), jnp.float32),
        b_neck=jnp.zeros((C_NECK,), jnp.float32),
        w_depth=s * jax.random.normal(ks[3], (D_DEPTH, C_BB), jnp.float32),
        b_depth=jnp.zeros((D_DEPTH,), jnp.float32),
        w_cam=s * jax.random.normal(ks[4], (16,), jnp.float32),
        b_cam=jnp.zeros((), jnp.float32),
        w_proj=s * jax.random.normal(ks[5], (P_PLANES, C_NECK, C_NECK), jnp.float32),
        b_proj=jnp.zeros((P_PLANES, C_NECK), jnp.float32),
        w_head=s * jax.random.normal(ks[6], (D_HEAD, C_NECK), jnp.float32),
        b_head=jnp.zeros((D_HEAD,), jnp.float32),
    )


def sparse_bev_seg_forward(params, batch):
    image = batch["image"]          # (b, n, 3, H, W)  NCHW per camera
    lidar2img = batch["lidar2img"]  # (b, n, 4, 4)
    b, n, c, H, W = image.shape
    hw = H * W

    # ---- image.flatten(0,1): stays channel-major, no transpose / channel pad ----
    img = image.reshape(b, n, c, hw)

    # ---- fold Normalize() into the backbone 1x1 conv:  W' = W*istd, b' = b - W'@mean
    w_bb_f = params["w_bb"] * params["istd"][None, :]
    b_bb_f = params["b_bb"] - w_bb_f @ params["mean"]

    # ---- camera weights from lidar2img (tiny scalar glue, stays in plain JAX) ----
    cam_logits = (jnp.einsum("bnk,k->bn", lidar2img.reshape(b, n, 16), params["w_cam"])
                  + params["b_cam"])
    alpha = jax.nn.softmax(cam_logits, axis=1)                    # (b, n)

    kparams = dict(
        w_bb_f=w_bb_f, b_bb_f=b_bb_f.reshape(C_BB, 1),
        w_neck=params["w_neck"], b_neck=params["b_neck"].reshape(C_NECK, 1),
        w_depth=params["w_depth"], b_depth=params["b_depth"].reshape(D_DEPTH, 1),
        w_proj=params["w_proj"], b_proj=params["b_proj"].reshape(P_PLANES, C_NECK, 1),
        w_head=params["w_head"], b_head=params["b_head"].reshape(D_HEAD, 1),
    )

    # ---- one fused pallas_call: backbone -> neck(+depth) -> encoder -> head+sum(p)
    bev, depth = fused_bev_call(alpha, img, kparams)

    bev_out = bev.reshape(b, D_HEAD, H, W)                        # NCHW, no transpose
    depth_out = depth.reshape(b * n, D_DEPTH, H, W)               # '(b n) d h w'

    mid_output = {}
    inter_output = []   # TODO(synk): intermediate encoder layers / aux head not modeled

    output = {"bev": bev_out}
    # aux = False -> no 'aux' key
    mid_output["inter_output"] = inter_output
    output["depth"] = depth_out
    output["mid_output"] = mid_output
    return output


if __name__ == "__main__":
    key = jax.random.PRNGKey(0)
    k_img, k_l2i, k_par = jax.random.split(key, 3)

    B, N, H, W = 2, 2, 16, 16
    batch = {
        "image": jax.random.uniform(k_img, (B, N, C_IN, H, W), jnp.float32),
        "lidar2img": jax.random.normal(k_l2i, (B, N, 4, 4), jnp.float32),
    }
    params = init_params(k_par)

    out = sparse_bev_seg_forward(params, batch)
    jax.block_until_ready(out["bev"])
    jax.block_until_ready(out["depth"])

    assert out["bev"].shape == (B, D_HEAD, H, W)
    assert out["depth"].shape == (B * N, D_DEPTH, H, W)
    print("KERNEL_OK")
</pallas_src>

<mosaic_0001>
module attributes {stable_mosaic.version = 11 : i64} {
  func.func @_fused_kernel(%arg0: i32, %arg1: i32, %arg2: memref<2x2xf32, #tpu.memory_space<smem>>, %arg3: memref<1x2x3x256xf32, #tpu.memory_space<vmem>>, %arg4: memref<8x3xf32, #tpu.memory_space<vmem>>, %arg5: memref<8x1xf32, #tpu.memory_space<vmem>>, %arg6: memref<16x8xf32, #tpu.memory_space<vmem>>, %arg7: memref<16x1xf32, #tpu.memory_space<vmem>>, %arg8: memref<4x8xf32, #tpu.memory_space<vmem>>, %arg9: memref<4x1xf32, #tpu.memory_space<vmem>>, %arg10: memref<2x16x16xf32, #tpu.memory_space<vmem>>, %arg11: memref<2x16x1xf32, #tpu.memory_space<vmem>>, %arg12: memref<1x16xf32, #tpu.memory_space<vmem>>, %arg13: memref<1x1xf32, #tpu.memory_space<vmem>>, %arg14: memref<1x1x256xf32, #tpu.memory_space<vmem>>, %arg15: memref<1x2x4x256xf32, #tpu.memory_space<vmem>>) attributes {dimension_semantics = [#tpu.dimension_semantics<parallel>, #tpu.dimension_semantics<parallel>], iteration_bounds = array<i64: 2, 1>, scalar_prefetch = 0 : i64, scratch_operands = 0 : i64, tpu.core_type = #tpu.core_type<tc>, window_params = [{transform_indices = @transform_0, window_bounds = array<i64: 2, 2>}, {transform_indices = @transform_1, window_bounds = array<i64: 1, 2, 3, 256>}, {pipeline_mode = #tpu.pipeline_mode<synchronous>, transform_indices = @transform_2, window_bounds = array<i64: 8, 3>}, {pipeline_mode = #tpu.pipeline_mode<synchronous>, transform_indices = @transform_3, window_bounds = array<i64: 8, 1>}, {pipeline_mode = #tpu.pipeline_mode<synchronous>, transform_indices = @transform_4, window_bounds = array<i64: 16, 8>}, {pipeline_mode = #tpu.pipeline_mode<synchronous>, transform_indices = @transform_5, window_bounds = array<i64: 16, 1>}, {pipeline_mode = #tpu.pipeline_mode<synchronous>, transform_indices = @transform_6, window_bounds = array<i64: 4, 8>}, {pipeline_mode = #tpu.pipeline_mode<synchronous>, transform_indices = @transform_7, window_bounds = array<i64: 4, 1>}, {pipeline_mode = #tpu.pipeline_mode<synchronous>, transform_indices = @transform_8, window_bounds = array<i64: 2, 16, 16>}, {pipeline_mode = #tpu.pipeline_mode<synchronous>, transform_indices = @transform_9, window_bounds = array<i64: 2, 16, 1>}, {pipeline_mode = #tpu.pipeline_mode<synchronous>, transform_indices = @transform_10, window_bounds = array<i64: 1, 16>}, {pipeline_mode = #tpu.pipeline_mode<synchronous>, transform_indices = @transform_11, window_bounds = array<i64: 1, 1>}, {transform_indices = @transform_12, window_bounds = array<i64: 1, 1, 256>}, {transform_indices = @transform_13, window_bounds = array<i64: 1, 2, 4, 256>}]} {
    %cst = arith.constant 0.000000e+00 : f32
    %0 = vector.broadcast %cst : f32 to vector<16x256xf32>
    %c0 = arith.constant 0 : index
    %c0_0 = arith.constant 0 : index
    %c0_1 = arith.constant 0 : index
    %c0_2 = arith.constant 0 : index
    %1 = vector.load %arg3[%c0, %c0_0, %c0_1, %c0_2] : memref<1x2x3x256xf32, #tpu.memory_space<vmem>>, vector<1x1x3x256xf32>
    %2 = vector.shape_cast %1 : vector<1x1x3x256xf32> to vector<3x256xf32>
    %c0_3 = arith.constant 0 : index
    %c0_4 = arith.constant 0 : index
    %3 = vector.load %arg4[%c0_3, %c0_4] : memref<8x3xf32, #tpu.memory_space<vmem>>, vector<8x1xf32>
    %4 = vector.extract_strided_slice %2 {offsets = [0, 0], sizes = [1, 256], strides = [1, 1]} : vector<3x256xf32> to vector<1x256xf32>
    %5 = vector.broadcast %3 : vector<8x1xf32> to vector<8x256xf32>
    %6 = vector.broadcast %4 : vector<1x256xf32> to vector<8x256xf32>
    %7 = arith.mulf %5, %6 : vector<8x256xf32>
    %c0_5 = arith.constant 0 : index
    %c1 = arith.constant 1 : index
    %8 = vector.load %arg4[%c0_5, %c1] : memref<8x3xf32, #tpu.memory_space<vmem>>, vector<8x1xf32>
    %9 = vector.extract_strided_slice %2 {offsets = [1, 0], sizes = [1, 256], strides = [1, 1]} : vector<3x256xf32> to vector<1x256xf32>
    %10 = vector.broadcast %8 : vector<8x1xf32> to vector<8x256xf32>
    %11 = vector.broadcast %9 : vector<1x256xf32> to vector<8x256xf32>
    %12 = arith.mulf %10, %11 : vector<8x256xf32>
    %13 = arith.addf %7, %12 : vector<8x256xf32>
    %c0_6 = arith.constant 0 : index
    %c2 = arith.constant 2 : index
    %14 = vector.load %arg4[%c0_6, %c2] : memref<8x3xf32, #tpu.memory_space<vmem>>, vector<8x1xf32>
    %15 = vector.extract_strided_slice %2 {offsets = [2, 0], sizes = [1, 256], strides = [1, 1]} : vector<3x256xf32> to vector<1x256xf32>
    %16 = vector.broadcast %14 : vector<8x1xf32> to vector<8x256xf32>
    %17 = vector.broadcast %15 : vector<1x256xf32> to vector<8x256xf32>
    %18 = arith.mulf %16, %17 : vector<8x256xf32>
    %19 = arith.addf %13, %18 : vector<8x256xf32>
    %c0_7 = arith.constant 0 : index
    %c0_8 = arith.constant 0 : index
    %20 = vector.load %arg5[%c0_7, %c0_8] : memref<8x1xf32, #tpu.memory_space<vmem>>, vector<8x1xf32>
    %21 = vector.broadcast %20 : vector<8x1xf32> to vector<8x256xf32>
    %22 = arith.addf %19, %21 : vector<8x256xf32>
    %cst_9 = arith.constant 0.000000e+00 : f32
    %23 = vector.broadcast %cst_9 : f32 to vector<8x256xf32>
    %24 = arith.maximumf %22, %23 : vector<8x256xf32>
    %c0_10 = arith.constant 0 : index
    %c0_11 = arith.constant 0 : index
    %25 = vector.load %arg6[%c0_10, %c0_11] : memref<16x8xf32, #tpu.memory_space<vmem>>, vector<16x8xf32>
    %cst_12 = arith.constant dense<0.000000e+00> : vector<16x256xf32>
    %26 = tpu.matmul %25, %24, %cst_12 {dimension_numbers = #tpu.dot_dimension_numbers<[1], [0], [0], [1], [0, 0, 1, 1], [], []>} : vector<16x8xf32>, vector<8x256xf32>, vector<16x256xf32> -> vector<16x256xf32>
    %c0_13 = arith.constant 0 : index
    %c0_14 = arith.constant 0 : index
    %27 = vector.load %arg7[%c0_13, %c0_14] : memref<16x1xf32, #tpu.memory_space<vmem>>, vector<16x1xf32>
    %28 = vector.broadcast %27 : vector<16x1xf32> to vector<16x256xf32>
    %29 = arith.addf %26, %28 : vector<16x256xf32>
    %cst_15 = arith.constant 0.000000e+00 : f32
    %30 = vector.broadcast %cst_15 : f32 to vector<16x256xf32>
    %31 = arith.maximumf %29, %30 : vector<16x256xf32>
    %c0_16 = arith.constant 0 : index
    %c0_17 = arith.constant 0 : index
    %32 = vector.load %arg8[%c0_16, %c0_17] : memref<4x8xf32, #tpu.memory_space<vmem>>, vector<4x8xf32>
    %cst_18 = arith.constant dense<0.000000e+00> : vector<4x256xf32>
    %33 = tpu.matmul %32, %24, %cst_18 {dimension_numbers = #tpu.dot_dimension_numbers<[1], [0], [0], [1], [0, 0, 1, 1], [], []>} : vector<4x8xf32>, vector<8x256xf32>, vector<4x256xf32> -> vector<4x256xf32>
    %c0_19 = arith.constant 0 : index
    %c0_20 = arith.constant 0 : index
    %34 = vector.load %arg9[%c0_19, %c0_20] : memref<4x1xf32, #tpu.memory_space<vmem>>, vector<4x1xf32>
    %35 = vector.broadcast %34 : vector<4x1xf32> to vector<4x256xf32>
    %36 = arith.addf %33, %35 : vector<4x256xf32>
    %37 = vector.extract_strided_slice %36 {offsets = [0, 0], sizes = [1, 256], strides = [1, 1]} : vector<4x256xf32> to vector<1x256xf32>
    %38 = vector.extract_strided_slice %36 {offsets = [1, 0], sizes = [1, 256], strides = [1, 1]} : vector<4x256xf32> to vector<1x256xf32>
    %39 = arith.maximumf %37, %38 : vector<1x256xf32>
    %40 = vector.extract_strided_slice %36 {offsets = [2, 0], sizes = [1, 256], strides = [1, 1]} : vector<4x256xf32> to vector<1x256xf32>
    %41 = arith.maximumf %39, %40 : vector<1x256xf32>
    %42 = vector.extract_strided_slice %36 {offsets = [3, 0], sizes = [1, 256], strides = [1, 1]} : vector<4x256xf32> to vector<1x256xf32>
    %43 = arith.maximumf %41, %42 : vector<1x256xf32>
    %44 = vector.broadcast %43 : vector<1x256xf32> to vector<4x256xf32>
    %45 = arith.subf %36, %44 : vector<4x256xf32>
    %46 = math.exp %45 : vector<4x256xf32>
    %47 = vector.extract_strided_slice %46 {offsets = [0, 0], sizes = [1, 256], strides = [1, 1]} : vector<4x256xf32> to vector<1x256xf32>
    %48 = vector.extract_strided_slice %46 {offsets = [1, 0], sizes = [1, 256], strides = [1, 1]} : vector<4x256xf32> to vector<1x256xf32>
    %49 = arith.addf %47, %48 : vector<1x256xf32>
    %50 = vector.extract_strided_slice %46 {offsets = [2, 0], sizes = [1, 256], strides = [1, 1]} : vector<4x256xf32> to vector<1x256xf32>
    %51 = arith.addf %49, %50 : vector<1x256xf32>
    %52 = vector.extract_strided_slice %46 {offsets = [3, 0], sizes = [1, 256], strides = [1, 1]} : vector<4x256xf32> to vector<1x256xf32>
    %53 = arith.addf %51, %52 : vector<1x256xf32>
    %54 = vector.broadcast %53 : vector<1x256xf32> to vector<4x256xf32>
    %55 = arith.divf %46, %54 : vector<4x256xf32>
    %c0_21 = arith.constant 0 : index
    %c0_22 = arith.constant 0 : index
    %c0_23 = arith.constant 0 : index
    %c0_24 = arith.constant 0 : index
    %56 = vector.load %arg15[%c0_21, %c0_22, %c0_23, %c0_24] : memref<1x2x4x256xf32, #tpu.memory_space<vmem>>, vector<1x1x4x256xf32>
    %57 = vector.shape_cast %56 : vector<1x1x4x256xf32> to vector<4x256xf32>
    %58 = vector.shape_cast %55 : vector<4x256xf32> to vector<1x1x4x256xf32>
    tpu.vector_store %arg15[%c0_21, %c0_22, %c0_23, %c0_24], %58 {strides = array<i32>} : memref<1x2x4x256xf32, #tpu.memory_space<vmem>>, vector<1x1x4x256xf32>,
    %59 = arith.index_cast %arg0 : i32 to index
    %c0_25 = arith.constant 0 : index
    %60 = memref.load %arg2[%59, %c0_25] : memref<2x2xf32, #tpu.memory_space<smem>>
    %61 = vector.broadcast %60 : f32 to vector<16x256xf32>
    %62 = arith.mulf %61, %31 : vector<16x256xf32>
    %63 = arith.addf %0, %62 : vector<16x256xf32>
    %c0_26 = arith.constant 0 : index
    %c1_27 = arith.constant 1 : index
    %c0_28 = arith.constant 0 : index
    %c0_29 = arith.constant 0 : index
    %64 = vector.load %arg3[%c0_26, %c1_27, %c0_28, %c0_29] : memref<1x2x3x256xf32, #tpu.memory_space<vmem>>, vector<1x1x3x256xf32>
    %65 = vector.shape_cast %64 : vector<1x1x3x256xf32> to vector<3x256xf32>
    %c0_30 = arith.constant 0 : index
    %c0_31 = arith.constant 0 : index
    %66 = vector.load %arg4[%c0_30, %c0_31] : memref<8x3xf32, #tpu.memory_space<vmem>>, vector<8x1xf32>
    %67 = vector.extract_strided_slice %65 {offsets = [0, 0], sizes = [1, 256], strides = [1, 1]} : vector<3x256xf32> to vector<1x256xf32>
    %68 = vector.broadcast %66 : vector<8x1xf32> to vector<8x256xf32>
    %69 = vector.broadcast %67 : vector<1x256xf32> to vector<8x256xf32>
    %70 = arith.mulf %68, %69 : vector<8x256xf32>
    %c0_32 = arith.constant 0 : index
    %c1_33 = arith.constant 1 : index
    %71 = vector.load %arg4[%c0_32, %c1_33] : memref<8x3xf32, #tpu.memory_space<vmem>>, vector<8x1xf32>
    %72 = vector.extract_strided_slice %65 {offsets = [1, 0], sizes = [1, 256], strides = [1, 1]} : vector<3x256xf32> to vector<1x256xf32>
    %73 = vector.broadcast %71 : vector<8x1xf32> to vector<8x256xf32>
    %74 = vector.broadcast %72 : vector<1x256xf32> to vector<8x256xf32>
    %75 = arith.mulf %73, %74 : vector<8x256xf32>
    %76 = arith.addf %70, %75 : vector<8x256xf32>
    %c0_34 = arith.constant 0 : index
    %c2_35 = arith.constant 2 : index
    %77 = vector.load %arg4[%c0_34, %c2_35] : memref<8x3xf32, #tpu.memory_space<vmem>>, vector<8x1xf32>
    %78 = vector.extract_strided_slice %65 {offsets = [2, 0], sizes = [1, 256], strides = [1, 1]} : vector<3x256xf32> to vector<1x256xf32>
    %79 = vector.broadcast %77 : vector<8x1xf32> to vector<8x256xf32>
    %80 = vector.broadcast %78 : vector<1x256xf32> to vector<8x256xf32>
    %81 = arith.mulf %79, %80 : vector<8x256xf32>
    %82 = arith.addf %76, %81 : vector<8x256xf32>
    %c0_36 = arith.constant 0 : index
    %c0_37 = arith.constant 0 : index
    %83 = vector.load %arg5[%c0_36, %c0_37] : memref<8x1xf32, #tpu.memory_space<vmem>>, vector<8x1xf32>
    %84 = vector.broadcast %83 : vector<8x1xf32> to vector<8x256xf32>
    %85 = arith.addf %82, %84 : vector<8x256xf32>
    %cst_38 = arith.constant 0.000000e+00 : f32
    %86 = vector.broadcast %cst_38 : f32 to vector<8x256xf32>
    %87 = arith.maximumf %85, %86 : vector<8x256xf32>
    %c0_39 = arith.constant 0 : index
    %c0_40 = arith.constant 0 : index
    %88 = vector.load %arg6[%c0_39, %c0_40] : memref<16x8xf32, #tpu.memory_space<vmem>>, vector<16x8xf32>
    %cst_41 = arith.constant dense<0.000000e+00> : vector<16x256xf32>
    %89 = tpu.matmul %88, %87, %cst_41 {dimension_numbers = #tpu.dot_dimension_numbers<[1], [0], [0], [1], [0, 0, 1, 1], [], []>} : vector<16x8xf32>, vector<8x256xf32>, vector<16x256xf32> -> vector<16x256xf32>
    %c0_42 = arith.constant 0 : index
    %c0_43 = arith.constant 0 : index
    %90 = vector.load %arg7[%c0_42, %c0_43] : memref<16x1xf32, #tpu.memory_space<vmem>>, vector<16x1xf32>
    %91 = vector.broadcast %90 : vector<16x1xf32> to vector<16x256xf32>
    %92 = arith.addf %89, %91 : vector<16x256xf32>
    %cst_44 = arith.constant 0.000000e+00 : f32
    %93 = vector.broadcast %cst_44 : f32 to vector<16x256xf32>
    %94 = arith.maximumf %92, %93 : vector<16x256xf32>
    %c0_45 = arith.constant 0 : index
    %c0_46 = arith.constant 0 : index
    %95 = vector.load %arg8[%c0_45, %c0_46] : memref<4x8xf32, #tpu.memory_space<vmem>>, vector<4x8xf32>
    %cst_47 = arith.constant dense<0.000000e+00> : vector<4x256xf32>
    %96 = tpu.matmul %95, %87, %cst_47 {dimension_numbers = #tpu.dot_dimension_numbers<[1], [0], [0], [1], [0, 0, 1, 1], [], []>} : vector<4x8xf32>, vector<8x256xf32>, vector<4x256xf32> -> vector<4x256xf32>
    %c0_48 = arith.constant 0 : index
    %c0_49 = arith.constant 0 : index
    %97 = vector.load %arg9[%c0_48, %c0_49] : memref<4x1xf32, #tpu.memory_space<vmem>>, vector<4x1xf32>
    %98 = vector.broadcast %97 : vector<4x1xf32> to vector<4x256xf32>
    %99 = arith.addf %96, %98 : vector<4x256xf32>
    %100 = vector.extract_strided_slice %99 {offsets = [0, 0], sizes = [1, 256], strides = [1, 1]} : vector<4x256xf32> to vector<1x256xf32>
    %101 = vector.extract_strided_slice %99 {offsets = [1, 0], sizes = [1, 256], strides = [1, 1]} : vector<4x256xf32> to vector<1x256xf32>
    %102 = arith.maximumf %100, %101 : vector<1x256xf32>
    %103 = vector.extract_strided_slice %99 {offsets = [2, 0], sizes = [1, 256], strides = [1, 1]} : vector<4x256xf32> to vector<1x256xf32>
    %104 = arith.maximumf %102, %103 : vector<1x256xf32>
    %105 = vector.extract_strided_slice %99 {offsets = [3, 0], sizes = [1, 256], strides = [1, 1]} : vector<4x256xf32> to vector<1x256xf32>
    %106 = arith.maximumf %104, %105 : vector<1x256xf32>
    %107 = vector.broadcast %106 : vector<1x256xf32> to vector<4x256xf32>
    %108 = arith.subf %99, %107 : vector<4x256xf32>
    %109 = math.exp %108 : vector<4x256xf32>
    %110 = vector.extract_strided_slice %109 {offsets = [0, 0], sizes = [1, 256], strides = [1, 1]} : vector<4x256xf32> to vector<1x256xf32>
    %111 = vector.extract_strided_slice %109 {offsets = [1, 0], sizes = [1, 256], strides = [1, 1]} : vector<4x256xf32> to vector<1x256xf32>
    %112 = arith.addf %110, %111 : vector<1x256xf32>
    %113 = vector.extract_strided_slice %109 {offsets = [2, 0], sizes = [1, 256], strides = [1, 1]} : vector<4x256xf32> to vector<1x256xf32>
    %114 = arith.addf %112, %113 : vector<1x256xf32>
    %115 = vector.extract_strided_slice %109 {offsets = [3, 0], sizes = [1, 256], strides = [1, 1]} : vector<4x256xf32> to vector<1x256xf32>
    %116 = arith.addf %114, %115 : vector<1x256xf32>
    %117 = vector.broadcast %116 : vector<1x256xf32> to vector<4x256xf32>
    %118 = arith.divf %109, %117 : vector<4x256xf32>
    %c0_50 = arith.constant 0 : index
    %c1_51 = arith.constant 1 : index
    %c0_52 = arith.constant 0 : index
    %c0_53 = arith.constant 0 : index
    %119 = vector.load %arg15[%c0_50, %c1_51, %c0_52, %c0_53] : memref<1x2x4x256xf32, #tpu.memory_space<vmem>>, vector<1x1x4x256xf32>
    %120 = vector.shape_cast %119 : vector<1x1x4x256xf32> to vector<4x256xf32>
    %121 = vector.shape_cast %118 : vector<4x256xf32> to vector<1x1x4x256xf32>
    tpu.vector_store %arg15[%c0_50, %c1_51, %c0_52, %c0_53], %121 {strides = array<i32>} : memref<1x2x4x256xf32, #tpu.memory_space<vmem>>, vector<1x1x4x256xf32>,
    %122 = arith.index_cast %arg0 : i32 to index
    %c1_54 = arith.constant 1 : index
    %123 = memref.load %arg2[%122, %c1_54] : memref<2x2xf32, #tpu.memory_space<smem>>
    %124 = vector.broadcast %123 : f32 to vector<16x256xf32>
    %125 = arith.mulf %124, %94 : vector<16x256xf32>
    %126 = arith.addf %63, %125 : vector<16x256xf32>
    %cst_55 = arith.constant 0.000000e+00 : f32
    %127 = vector.broadcast %cst_55 : f32 to vector<1x256xf32>
    %c0_56 = arith.constant 0 : index
    %c0_57 = arith.constant 0 : index
    %c0_58 = arith.constant 0 : index
    %128 = vector.load %arg10[%c0_56, %c0_57, %c0_58] : memref<2x16x16xf32, #tpu.memory_space<vmem>>, vector<1x16x16xf32>
    %129 = vector.shape_cast %128 : vector<1x16x16xf32> to vector<16x16xf32>
    %cst_59 = arith.constant dense<0.000000e+00> : vector<16x256xf32>
    %130 = tpu.matmul %129, %126, %cst_59 {dimension_numbers = #tpu.dot_dimension_numbers<[1], [0], [0], [1], [0, 0, 1, 1], [], []>} : vector<16x16xf32>, vector<16x256xf32>, vector<16x256xf32> -> vector<16x256xf32>
    %c0_60 = arith.constant 0 : index
    %c0_61 = arith.constant 0 : index
    %c0_62 = arith.constant 0 : index
    %131 = vector.load %arg11[%c0_60, %c0_61, %c0_62] : memref<2x16x1xf32, #tpu.memory_space<vmem>>, vector<1x16x1xf32>
    %132 = vector.shape_cast %131 : vector<1x16x1xf32> to vector<16x1xf32>
    %133 = vector.broadcast %132 : vector<16x1xf32> to vector<16x256xf32>
    %134 = arith.addf %130, %133 : vector<16x256xf32>
    %c0_63 = arith.constant 0 : index
    %c0_64 = arith.constant 0 : index
    %135 = vector.load %arg12[%c0_63, %c0_64] : memref<1x16xf32, #tpu.memory_space<vmem>>, vector<1x16xf32>
    %cst_65 = arith.constant dense<0.000000e+00> : vector<1x256xf32>
    %136 = tpu.matmul %135, %134, %cst_65 {dimension_numbers = #tpu.dot_dimension_numbers<[1], [0], [0], [1], [0, 0, 1, 1], [], []>} : vector<1x16xf32>, vector<16x256xf32>, vector<1x256xf32> -> vector<1x256xf32>
    %c0_66 = arith.constant 0 : index
    %c0_67 = arith.constant 0 : index
    %137 = vector.load %arg13[%c0_66, %c0_67] : memref<1x1xf32, #tpu.memory_space<vmem>>, vector<1x1xf32>
    %138 = vector.broadcast %137 : vector<1x1xf32> to vector<1x256xf32>
    %139 = arith.addf %136, %138 : vector<1x256xf32>
    %140 = arith.addf %127, %139 : vector<1x256xf32>
    %c1_68 = arith.constant 1 : index
    %c0_69 = arith.constant 0 : index
    %c0_70 = arith.constant 0 : index
    %141 = vector.load %arg10[%c1_68, %c0_69, %c0_70] : memref<2x16x16xf32, #tpu.memory_space<vmem>>, vector<1x16x16xf32>
    %142 = vector.shape_cast %141 : vector<1x16x16xf32> to vector<16x16xf32>
    %cst_71 = arith.constant dense<0.000000e+00> : vector<16x256xf32>
    %143 = tpu.matmul %142, %126, %cst_71 {dimension_numbers = #tpu.dot_dimension_numbers<[1], [0], [0], [1], [0, 0, 1, 1], [], []>} : vector<16x16xf32>, vector<16x256xf32>, vector<16x256xf32> -> vector<16x256xf32>
    %c1_72 = arith.constant 1 : index
    %c0_73 = arith.constant 0 : index
    %c0_74 = arith.constant 0 : index
    %144 = vector.load %arg11[%c1_72, %c0_73, %c0_74] : memref<2x16x1xf32, #tpu.memory_space<vmem>>, vector<1x16x1xf32>
    %145 = vector.shape_cast %144 : vector<1x16x1xf32> to vector<16x1xf32>
    %146 = vector.broadcast %145 : vector<16x1xf32> to vector<16x256xf32>
    %147 = arith.addf %143, %146 : vector<16x256xf32>
    %c0_75 = arith.constant 0 : index
    %c0_76 = arith.constant 0 : index
    %148 = vector.load %arg12[%c0_75, %c0_76] : memref<1x16xf32, #tpu.memory_space<vmem>>, vector<1x16xf32>
    %cst_77 = arith.constant dense<0.000000e+00> : vector<1x256xf32>
    %149 = tpu.matmul %148, %147, %cst_77 {dimension_numbers = #tpu.dot_dimension_numbers<[1], [0], [0], [1], [0, 0, 1, 1], [], []>} : vector<1x16xf32>, vector<16x256xf32>, vector<1x256xf32> -> vector<1x256xf32>
    %c0_78 = arith.constant 0 : index
    %c0_79 = arith.constant 0 : index
    %150 = vector.load %arg13[%c0_78, %c0_79] : memref<1x1xf32, #tpu.memory_space<vmem>>, vector<1x1xf32>
    %151 = vector.broadcast %150 : vector<1x1xf32> to vector<1x256xf32>
    %152 = arith.addf %149, %151 : vector<1x256xf32>
    %153 = arith.addf %140, %152 : vector<1x256xf32>
    %c0_80 = arith.constant 0 : index
    %c0_81 = arith.constant 0 : index
    %c0_82 = arith.constant 0 : index
    %154 = vector.load %arg14[%c0_80, %c0_81, %c0_82] : memref<1x1x256xf32, #tpu.memory_space<vmem>>, vector<1x1x256xf32>
    %155 = vector.shape_cast %154 : vector<1x1x256xf32> to vector<1x256xf32>
    %156 = vector.shape_cast %153 : vector<1x256xf32> to vector<1x1x256xf32>
    tpu.vector_store %arg14[%c0_80, %c0_81, %c0_82], %156 {strides = array<i32>} : memref<1x1x256xf32, #tpu.memory_space<vmem>>, vector<1x1x256xf32>,
    return
  }
  func.func @transform_0(%arg0: i32, %arg1: i32) -> (i32, i32) {
    %c0_i32 = arith.constant 0 : i32
    %c0_i32_0 = arith.constant 0 : i32
    %c0_i32_1 = arith.constant 0 : i32
    return %c0_i32, %c0_i32_0 : i32, i32
  }
  func.func @transform_1(%arg0: i32, %arg1: i32) -> (i32, i32, i32, i32) {
    %c0_i32 = arith.constant 0 : i32
    %c0_i32_0 = arith.constant 0 : i32
    %c0_i32_1 = arith.constant 0 : i32
    return %arg0, %c0_i32, %c0_i32_0, %arg1 : i32, i32, i32, i32
  }
  func.func @transform_2(%arg0: i32, %arg1: i32) -> (i32, i32) {
    %c0_i32 = arith.constant 0 : i32
    %c0_i32_0 = arith.constant 0 : i32
    %c0_i32_1 = arith.constant 0 : i32
    return %c0_i32, %c0_i32_0 : i32, i32
  }
  func.func @transform_3(%arg0: i32, %arg1: i32) -> (i32, i32) {
    %c0_i32 = arith.constant 0 : i32
    %c0_i32_0 = arith.constant 0 : i32
    %c0_i32_1 = arith.constant 0 : i32
    return %c0_i32, %c0_i32_0 : i32, i32
  }
  func.func @transform_4(%arg0: i32, %arg1: i32) -> (i32, i32) {
    %c0_i32 = arith.constant 0 : i32
    %c0_i32_0 = arith.constant 0 : i32
    %c0_i32_1 = arith.constant 0 : i32
    return %c0_i32, %c0_i32_0 : i32, i32
  }
  func.func @transform_5(%arg0: i32, %arg1: i32) -> (i32, i32) {
    %c0_i32 = arith.constant 0 : i32
    %c0_i32_0 = arith.constant 0 : i32
    %c0_i32_1 = arith.constant 0 : i32
    return %c0_i32, %c0_i32_0 : i32, i32
  }
  func.func @transform_6(%arg0: i32, %arg1: i32) -> (i32, i32) {
    %c0_i32 = arith.constant 0 : i32
    %c0_i32_0 = arith.constant 0 : i32
    %c0_i32_1 = arith.constant 0 : i32
    return %c0_i32, %c0_i32_0 : i32, i32
  }
  func.func @transform_7(%arg0: i32, %arg1: i32) -> (i32, i32) {
    %c0_i32 = arith.constant 0 : i32
    %c0_i32_0 = arith.constant 0 : i32
    %c0_i32_1 = arith.constant 0 : i32
    return %c0_i32, %c0_i32_0 : i32, i32
  }
  func.func @transform_8(%arg0: i32, %arg1: i32) -> (i32, i32, i32) {
    %c0_i32 = arith.constant 0 : i32
    %c0_i32_0 = arith.constant 0 : i32
    %c0_i32_1 = arith.constant 0 : i32
    %c0_i32_2 = arith.constant 0 : i32
    return %c0_i32, %c0_i32_0, %c0_i32_1 : i32, i32, i32
  }
  func.func @transform_9(%arg0: i32, %arg1: i32) -> (i32, i32, i32) {
    %c0_i32 = arith.constant 0 : i32
    %c0_i32_0 = arith.constant 0 : i32
    %c0_i32_1 = arith.constant 0 : i32
    %c0_i32_2 = arith.constant 0 : i32
    return %c0_i32, %c0_i32_0, %c0_i32_1 : i32, i32, i32
  }
  func.func @transform_10(%arg0: i32, %arg1: i32) -> (i32, i32) {
    %c0_i32 = arith.constant 0 : i32
    %c0_i32_0 = arith.constant 0 : i32
    %c0_i32_1 = arith.constant 0 : i32
    return %c0_i32, %c0_i32_0 : i32, i32
  }
  func.func @transform_11(%arg0: i32, %arg1: i32) -> (i32, i32) {
    %c0_i32 = arith.constant 0 : i32
    %c0_i32_0 = arith.constant 0 : i32
    %c0_i32_1 = arith.constant 0 : i32
    return %c0_i32, %c0_i32_0 : i32, i32
  }
  func.func @transform_12(%arg0: i32, %arg1: i32) -> (i32, i32, i32) {
    %c0_i32 = arith.constant 0 : i32
    %c0_i32_0 = arith.constant 0 : i32
    return %arg0, %c0_i32, %arg1 : i32, i32, i32
  }
  func.func @transform_13(%arg0: i32, %arg1: i32) -> (i32, i32, i32, i32) {
    %c0_i32 = arith.constant 0 : i32
    %c0_i32_0 = arith.constant 0 : i32
    %c0_i32_1 = arith.constant 0 : i32
    return %arg0, %c0_i32, %c0_i32_0, %arg1 : i32, i32, i32, i32
  }
}

</mosaic_0001>

<llo_original>
// kernel: tpu_custom_call.1
$region0: #{tpu_custom_call.1}
  #allocation0 [shape = 'u32[]', space=smem, size = 0x4, offset = 0x4, fixed_abs, tag = 'smem constant byte address 0x4 - core index']
  #allocation1 [shape = 'u32[144,128]{1,0:T(1,128)}', space=vmem, size = 0x12000, scoped, tag = 'internal scratch']
  #allocation2 [shape = 'f32[1,1]{1,0:T(1,128)S(1)}', space=vmem, size = 0x200, scoped, tag = 'scoped memory for tpu_custom_call.1']
  %s0 = inlined_call_operand.vmem [shape: f32[2,2], index: 0, kind: input, shape index: {}]
  %s1 = inlined_call_operand.vmem [shape: f32[2,2,3,256], index: 1, kind: input, shape index: {}]
  %s2 = inlined_call_operand.vmem [shape: f32[8,3], index: 2, kind: input, shape index: {}]
  %s3 = inlined_call_operand.vmem [shape: f32[8,1], index: 3, kind: input, shape index: {}]
  %s4 = inlined_call_operand.vmem [shape: f32[16,8], index: 4, kind: input, shape index: {}]
  %s5 = inlined_call_operand.vmem [shape: f32[16,1], index: 5, kind: input, shape index: {}]
  %s6 = inlined_call_operand.vmem [shape: f32[4,8], index: 6, kind: input, shape index: {}]
  %s7 = inlined_call_operand.vmem [shape: f32[4,1], index: 7, kind: input, shape index: {}]
  %s8 = inlined_call_operand.vmem [shape: f32[2,16,16], index: 8, kind: input, shape index: {}]
  %s9 = inlined_call_operand.vmem [shape: f32[2,16,1], index: 9, kind: input, shape index: {}]
  %s10 = inlined_call_operand.vmem [shape: f32[1,16], index: 10, kind: input, shape index: {}]
  %s11 = inlined_call_operand.<no memory space> [shape: f32[1,1], index: 11, kind: input, shape index: {}]
  %s12 = inlined_call_operand.hbm [shape: f32[2,1,256], index: 12, kind: output, shape index: {0}]
  %s13 = inlined_call_operand.hbm [shape: f32[2,2,4,256], index: 13, kind: output, shape index: {1}]
  %14 = xla_tuple %s12, %s13
  %s15 = sld [smem:[#allocation0]]
  $region93: #{tpu_custom_call.1} parent=0
    _
  %s17 = ssub.s32 1, %s15
  %s18 = scalar_select 0, %s17, %s15
  %v19 = vstv %s11
  %20 = vst [vmem:[#allocation2] sm:$0x1] %v19
  $region1: #{tpu_custom_call.1} parent=0
    #allocation3 [shape = 'u8[1024]{0}', space=smem, size = 0x400, scoped, tag = 'input window, operand 0, single buffered']
    #allocation4 [shape = 's32[2]{0}', space=sflag, size = 0x8, scoped, tag = 'scoped memory for tpu_custom_call.1']
    #allocation5 [shape = 's32[2]{0}', space=sflag, size = 0x8, scoped, tag = 'scoped memory for tpu_custom_call.1']
    #allocation6 [shape = 'u8[2048]{0}', space=vmem, size = 0x800, scoped, tag = 'output window, operand 0']
    #allocation7 [shape = 'u8[16384]{0}', space=vmem, size = 0x4000, scoped, tag = 'output window, operand 1']
    #allocation8 [shape = 's32[2]{0}', space=sflag, size = 0x8, scoped, tag = 'scoped memory for tpu_custom_call.1']
    %21 = vsyncpa [#allocation5], 0
    %22 = vsyncpa [#allocation4], 0
    %s23 = scalar_lea.sflag [#allocation4], 1
    %24 = vsyncpa %s23, 0
    %25 = vsyncpa [#allocation8], 0
    %s26 = scalar_lea.sflag [#allocation8], 1
    %27 = vsyncpa %s26, 0
    loop: start=0, step=1, limit=4
    $region2: #{tpu_custom_call.1} parent=1 // loop_pre_header
      _
    $region3: #{tpu_custom_call.1} parent=1 // loop_header
      %s29 = sphi 0, %s33
      %p30 = scmp.ge.s32.totalorder %s29, 4
      %s36 = sphi 0, %s48
      %s37 = sphi 0, %s44
      %s38 = sphi 0, %s36
      %s39 = sphi 0, %s37
      %s40 = sphi 0, %s38
      %s41 = sphi 0, %s39
      %s49 = sphi 0, %s49
      %s51 = sphi 0, %s49
      %s52 = sphi 0, %s51
      %s66 = sphi 0, %s52
      %s74 = sphi 0, %s76
      %s77 = sphi 0, %s74
      %s78 = sphi 0, %s77
      %s94 = sphi 0, %s78
      %s98 = sphi 0, %s98
      %s100 = sphi 0, %s98
      %s101 = sphi 0, %s100
      %s115 = sphi 0, %s101
      %s119 = sphi 0, %s119
      %s121 = sphi 0, %s119
      %s122 = sphi 0, %s121
      %s136 = sphi 0, %s122
      %s140 = sphi 0, %s140
      %s142 = sphi 0, %s140
      %s143 = sphi 0, %s142
      %s157 = sphi 0, %s143
      %s161 = sphi 0, %s161
      %s163 = sphi 0, %s161
      %s164 = sphi 0, %s163
      %s178 = sphi 0, %s164
      %s182 = sphi 0, %s182
      %s184 = sphi 0, %s182
      %s185 = sphi 0, %s184
      %s199 = sphi 0, %s185
      %s203 = sphi 0, %s203
      %s205 = sphi 0, %s203
      %s206 = sphi 0, %s205
      %s220 = sphi 0, %s206
      %s224 = sphi 0, %s224
      %s226 = sphi 0, %s224
      %s227 = sphi 0, %s226
      %s241 = sphi 0, %s227
      %s245 = sphi 0, %s245
      %s247 = sphi 0, %s245
      %s248 = sphi 0, %s247
      %s262 = sphi 0, %s248
      %s266 = sphi 0, %s266
      %s268 = sphi 0, %s266
      %s269 = sphi 0, %s268
      %s283 = sphi 0, %s269
      %s287 = sphi 0, %s287
      %s289 = sphi 0, %s287
      %s290 = sphi 0, %s289
      %s304 = sphi 0, %s290
      %s312 = sphi 0, %s314
      %s315 = sphi 0, %s312
      %s316 = sphi 0, %s315
      %s332 = sphi 0, %s316
      %s340 = sphi 0, %s342
      %s343 = sphi 0, %s340
      %s344 = sphi 0, %s343
      %s360 = sphi 0, %s344
    $region4: #{tpu_custom_call.1} parent=1 // loop_header_branch
      %32 = sbr.rel (%p30) target = $region8
    $region5: #{tpu_custom_call.1} parent=1 // loop_body
      %s34 = ssub.s32 %s29, 1
      %s35 = ssub.s32 %s29, 2
      %s42 = sadd.s32 1, %s37
      %p43 = scmp.ge.s32.totalorder %s42, 1
      %s44 = scalar_select %p43, 0, %s42
      %s45 = sadd.s32 1, %s36
      %s46 = scalar_select %p43, %s45, %s36
      %p47 = scmp.ge.s32.totalorder %s46, 2
      %s48 = scalar_select %p47, 0, %s46
      %s50 = sadd.s32 %s49, 1
      %p53 = scmp.eq.s32.totalorder %s29, 1
      %p54 = scmp.ne.s32.totalorder %s49, %s51
      %p55 = scmp.eq.s32.totalorder %s29, 0
      %p56 = por %p54, %p55
      %p57 = scmp.ne.s32.totalorder %s49, %s51
      %p58 = scmp.eq.s32.totalorder %s34, 1
      %p59 = por %p57, %p58
      %p60 = scmp.ne.s32.totalorder %s51, %s52
      %p61 = scmp.eq.s32.totalorder %s34, 0
      %p62 = por %p60, %p61
      %p63 = scmp.ne.s32.totalorder %s51, %s52
      %p64 = scmp.eq.s32.totalorder %s35, 1
      %p65 = por %p63, %p64
      %p67 = scmp.ne.s32.totalorder %s52, %s66
      %p68 = scmp.eq.s32.totalorder %s35, 0
      %p69 = por %p67, %p68
      %s70 = ssub.s32 %s36, %s48
      %s71 = ssub.s32 %s37, %s44
      %s72 = sor.u32 %s70, %s71
      %p73 = scmp.eq.s32.totalorder %s72, 0
      %s75 = sadd.s32 %s74, 1
      %s76 = scalar_select %p73, %s74, %s75
      %p79 = pneg %p73
      %p80 = scmp.eq.s32.totalorder %s29, 1
      %p81 = por %p79, %p80
      %p82 = scmp.ne.s32.totalorder %s74, %s77
      %p83 = scmp.eq.s32.totalorder %s29, 0
      %p84 = por %p82, %p83
      %p85 = scmp.ne.s32.totalorder %s74, %s77
      %p86 = scmp.eq.s32.totalorder %s34, 1
      %p87 = por %p85, %p86
      %p88 = scmp.ne.s32.totalorder %s77, %s78
      %p89 = scmp.eq.s32.totalorder %s34, 0
      %p90 = por %p88, %p89
      %p91 = scmp.ne.s32.totalorder %s77, %s78
      %p92 = scmp.eq.s32.totalorder %s35, 1
      %p93 = por %p91, %p92
      %p95 = scmp.ne.s32.totalorder %s78, %s94
      %p96 = scmp.eq.s32.totalorder %s35, 0
      %p97 = por %p95, %p96
      %s99 = sadd.s32 %s98, 1
      %p102 = scmp.eq.s32.totalorder %s29, 1
      %p103 = scmp.ne.s32.totalorder %s98, %s100
      %p104 = scmp.eq.s32.totalorder %s29, 0
      %p105 = por %p103, %p104
      %p106 = scmp.ne.s32.totalorder %s98, %s100
      %p107 = scmp.eq.s32.totalorder %s34, 1
      %p108 = por %p106, %p107
      %p109 = scmp.ne.s32.totalorder %s100, %s101
      %p110 = scmp.eq.s32.totalorder %s34, 0
      %p111 = por %p109, %p110
      %p112 = scmp.ne.s32.totalorder %s100, %s101
      %p113 = scmp.eq.s32.totalorder %s35, 1
      %p114 = por %p112, %p113
      %p116 = scmp.ne.s32.totalorder %s101, %s115
      %p117 = scmp.eq.s32.totalorder %s35, 0
      %p118 = por %p116, %p117
      %s120 = sadd.s32 %s119, 1
      %p123 = scmp.eq.s32.totalorder %s29, 1
      %p124 = scmp.ne.s32.totalorder %s119, %s121
      %p125 = scmp.eq.s32.totalorder %s29, 0
      %p126 = por %p124, %p125
      %p127 = scmp.ne.s32.totalorder %s119, %s121
      %p128 = scmp.eq.s32.totalorder %s34, 1
      %p129 = por %p127, %p128
      %p130 = scmp.ne.s32.totalorder %s121, %s122
      %p131 = scmp.eq.s32.totalorder %s34, 0
      %p132 = por %p130, %p131
      %p133 = scmp.ne.s32.totalorder %s121, %s122
      %p134 = scmp.eq.s32.totalorder %s35, 1
      %p135 = por %p133, %p134
      %p137 = scmp.ne.s32.totalorder %s122, %s136
      %p138 = scmp.eq.s32.totalorder %s35, 0
      %p139 = por %p137, %p138
      %s141 = sadd.s32 %s140, 1
      %p144 = scmp.eq.s32.totalorder %s29, 1
      %p145 = scmp.ne.s32.totalorder %s140, %s142
      %p146 = scmp.eq.s32.totalorder %s29, 0
      %p147 = por %p145, %p146
      %p148 = scmp.ne.s32.totalorder %s140, %s142
      %p149 = scmp.eq.s32.totalorder %s34, 1
      %p150 = por %p148, %p149
      %p151 = scmp.ne.s32.totalorder %s142, %s143
      %p152 = scmp.eq.s32.totalorder %s34, 0
      %p153 = por %p151, %p152
      %p154 = scmp.ne.s32.totalorder %s142, %s143
      %p155 = scmp.eq.s32.totalorder %s35, 1
      %p156 = por %p154, %p155
      %p158 = scmp.ne.s32.totalorder %s143, %s157
      %p159 = scmp.eq.s32.totalorder %s35, 0
      %p160 = por %p158, %p159
      %s162 = sadd.s32 %s161, 1
      %p165 = scmp.eq.s32.totalorder %s29, 1
      %p166 = scmp.ne.s32.totalorder %s161, %s163
      %p167 = scmp.eq.s32.totalorder %s29, 0
      %p168 = por %p166, %p167
      %p169 = scmp.ne.s32.totalorder %s161, %s163
      %p170 = scmp.eq.s32.totalorder %s34, 1
      %p171 = por %p169, %p170
      %p172 = scmp.ne.s32.totalorder %s163, %s164
      %p173 = scmp.eq.s32.totalorder %s34, 0
      %p174 = por %p172, %p173
      %p175 = scmp.ne.s32.totalorder %s163, %s164
      %p176 = scmp.eq.s32.totalorder %s35, 1
      %p177 = por %p175, %p176
      %p179 = scmp.ne.s32.totalorder %s164, %s178
      %p180 = scmp.eq.s32.totalorder %s35, 0
      %p181 = por %p179, %p180
      %s183 = sadd.s32 %s182, 1
      %p186 = scmp.eq.s32.totalorder %s29, 1
      %p187 = scmp.ne.s32.totalorder %s182, %s184
      %p188 = scmp.eq.s32.totalorder %s29, 0
      %p189 = por %p187, %p188
      %p190 = scmp.ne.s32.totalorder %s182, %s184
      %p191 = scmp.eq.s32.totalorder %s34, 1
      %p192 = por %p190, %p191
      %p193 = scmp.ne.s32.totalorder %s184, %s185
      %p194 = scmp.eq.s32.totalorder %s34, 0
      %p195 = por %p193, %p194
      %p196 = scmp.ne.s32.totalorder %s184, %s185
      %p197 = scmp.eq.s32.totalorder %s35, 1
      %p198 = por %p196, %p197
      %p200 = scmp.ne.s32.totalorder %s185, %s199
      %p201 = scmp.eq.s32.totalorder %s35, 0
      %p202 = por %p200, %p201
      %s204 = sadd.s32 %s203, 1
      %p207 = scmp.eq.s32.totalorder %s29, 1
      %p208 = scmp.ne.s32.totalorder %s203, %s205
      %p209 = scmp.eq.s32.totalorder %s29, 0
      %p210 = por %p208, %p209
      %p211 = scmp.ne.s32.totalorder %s203, %s205
      %p212 = scmp.eq.s32.totalorder %s34, 1
      %p213 = por %p211, %p212
      %p214 = scmp.ne.s32.totalorder %s205, %s206
      %p215 = scmp.eq.s32.totalorder %s34, 0
      %p216 = por %p214, %p215
      %p217 = scmp.ne.s32.totalorder %s205, %s206
      %p218 = scmp.eq.s32.totalorder %s35, 1
      %p219 = por %p217, %p218
      %p221 = scmp.ne.s32.totalorder %s206, %s220
      %p222 = scmp.eq.s32.totalorder %s35, 0
      %p223 = por %p221, %p222
      %s225 = sadd.s32 %s224, 1
      %p228 = scmp.eq.s32.totalorder %s29, 1
      %p229 = scmp.ne.s32.totalorder %s224, %s226
      %p230 = scmp.eq.s32.totalorder %s29, 0
      %p231 = por %p229, %p230
      %p232 = scmp.ne.s32.totalorder %s224, %s226
      %p233 = scmp.eq.s32.totalorder %s34, 1
      %p234 = por %p232, %p233
      %p235 = scmp.ne.s32.totalorder %s226, %s227
      %p236 = scmp.eq.s32.totalorder %s34, 0
      %p237 = por %p235, %p236
      %p238 = scmp.ne.s32.totalorder %s226, %s227
      %p239 = scmp.eq.s32.totalorder %s35, 1
      %p240 = por %p238, %p239
      %p242 = scmp.ne.s32.totalorder %s227, %s241
      %p243 = scmp.eq.s32.totalorder %s35, 0
      %p244 = por %p242, %p243
      %s246 = sadd.s32 %s245, 1
      %p249 = scmp.eq.s32.totalorder %s29, 1
      %p250 = scmp.ne.s32.totalorder %s245, %s247
      %p251 = scmp.eq.s32.totalorder %s29, 0
      %p252 = por %p250, %p251
      %p253 = scmp.ne.s32.totalorder %s245, %s247
      %p254 = scmp.eq.s32.totalorder %s34, 1
      %p255 = por %p253, %p254
      %p256 = scmp.ne.s32.totalorder %s247, %s248
      %p257 = scmp.eq.s32.totalorder %s34, 0
      %p258 = por %p256, %p257
      %p259 = scmp.ne.s32.totalorder %s247, %s248
      %p260 = scmp.eq.s32.totalorder %s35, 1
      %p261 = por %p259, %p260
      %p263 = scmp.ne.s32.totalorder %s248, %s262
      %p264 = scmp.eq.s32.totalorder %s35, 0
      %p265 = por %p263, %p264
      %s267 = sadd.s32 %s266, 1
      %p270 = scmp.eq.s32.totalorder %s29, 1
      %p271 = scmp.ne.s32.totalorder %s266, %s268
      %p272 = scmp.eq.s32.totalorder %s29, 0
      %p273 = por %p271, %p272
      %p274 = scmp.ne.s32.totalorder %s266, %s268
      %p275 = scmp.eq.s32.totalorder %s34, 1
      %p276 = por %p274, %p275
      %p277 = scmp.ne.s32.totalorder %s268, %s269
      %p278 = scmp.eq.s32.totalorder %s34, 0
      %p279 = por %p277, %p278
      %p280 = scmp.ne.s32.totalorder %s268, %s269
      %p281 = scmp.eq.s32.totalorder %s35, 1
      %p282 = por %p280, %p281
      %p284 = scmp.ne.s32.totalorder %s269, %s283
      %p285 = scmp.eq.s32.totalorder %s35, 0
      %p286 = por %p284, %p285
      %s288 = sadd.s32 %s287, 1
      %p291 = scmp.eq.s32.totalorder %s29, 1
      %p292 = scmp.ne.s32.totalorder %s287, %s289
      %p293 = scmp.eq.s32.totalorder %s29, 0
      %p294 = por %p292, %p293
      %p295 = scmp.ne.s32.totalorder %s287, %s289
      %p296 = scmp.eq.s32.totalorder %s34, 1
      %p297 = por %p295, %p296
      %p298 = scmp.ne.s32.totalorder %s289, %s290
      %p299 = scmp.eq.s32.totalorder %s34, 0
      %p300 = por %p298, %p299
      %p301 = scmp.ne.s32.totalorder %s289, %s290
      %p302 = scmp.eq.s32.totalorder %s35, 1
      %p303 = por %p301, %p302
      %p305 = scmp.ne.s32.totalorder %s290, %s304
      %p306 = scmp.eq.s32.totalorder %s35, 0
      %p307 = por %p305, %p306
      %s308 = ssub.s32 %s36, %s48
      %s309 = ssub.s32 %s37, %s44
      %s310 = sor.u32 %s308, %s309
      %p311 = scmp.eq.s32.totalorder %s310, 0
      %s313 = sadd.s32 %s312, 1
      %s314 = scalar_select %p311, %s312, %s313
      %p317 = pneg %p311
      %p318 = scmp.eq.s32.totalorder %s29, 1
      %p319 = por %p317, %p318
      %p320 = scmp.ne.s32.totalorder %s312, %s315
      %p321 = scmp.eq.s32.totalorder %s29, 0
      %p322 = por %p320, %p321
      %p323 = scmp.ne.s32.totalorder %s312, %s315
      %p324 = scmp.eq.s32.totalorder %s34, 1
      %p325 = por %p323, %p324
      %p326 = scmp.ne.s32.totalorder %s315, %s316
      %p327 = scmp.eq.s32.totalorder %s34, 0
      %p328 = por %p326, %p327
      %p329 = scmp.ne.s32.totalorder %s315, %s316
      %p330 = scmp.eq.s32.totalorder %s35, 1
      %p331 = por %p329, %p330
      %p333 = scmp.ne.s32.totalorder %s316, %s332
      %p334 = scmp.eq.s32.totalorder %s35, 0
      %p335 = por %p333, %p334
      %s336 = ssub.s32 %s36, %s48
      %s337 = ssub.s32 %s37, %s44
      %s338 = sor.u32 %s336, %s337
      %p339 = scmp.eq.s32.totalorder %s338, 0
      %s341 = sadd.s32 %s340, 1
      %s342 = scalar_select %p339, %s340, %s341
      %p345 = pneg %p339
      %p346 = scmp.eq.s32.totalorder %s29, 1
      %p347 = por %p345, %p346
      %p348 = scmp.ne.s32.totalorder %s340, %s343
      %p349 = scmp.eq.s32.totalorder %s29, 0
      %p350 = por %p348, %p349
      %p351 = scmp.ne.s32.totalorder %s340, %s343
      %p352 = scmp.eq.s32.totalorder %s34, 1
      %p353 = por %p351, %p352
      %p354 = scmp.ne.s32.totalorder %s343, %s344
      %p355 = scmp.eq.s32.totalorder %s34, 0
      %p356 = por %p354, %p355
      %p357 = scmp.ne.s32.totalorder %s343, %s344
      %p358 = scmp.eq.s32.totalorder %s35, 1
      %p359 = por %p357, %p358
      %p361 = scmp.ne.s32.totalorder %s344, %s360
      %p362 = scmp.eq.s32.totalorder %s35, 0
      %p363 = por %p361, %p362
      %p364 = scmp.le.s32.totalorder 1, %s29
      %p365 = scmp.lt.s32.totalorder %s29, 3
      %p366 = pnand %p364, %p365
      %p367 = pneg %p366
      // Predicated region
      $region9: #{tpu_custom_call.1} parent=5 // pred_check
        _
      $region10: #{tpu_custom_call.1} parent=5 // pred_check_branch
        %369 = sbr.rel (%p366) target = $region12
      $region11: #{tpu_custom_call.1} parent=5 // pred_region
        %s370 = ssub.s32 %s29, 1
        // Predicated region
        $region13: #{tpu_custom_call.1} parent=11 // pred_check
          %p371 = pneg %p62
        $region14: #{tpu_custom_call.1} parent=11 // pred_check_branch
          %373 = sbr.rel (%p371) target = $region16
        $region15: #{tpu_custom_call.1} parent=11 // pred_region
          %s375 = ssub.s32 32, 32
          %376 = vsyncadd [#allocation5], %s375
          %s378 = sshll.u32 %s0, 4
          %s379 = int_to_ptr.vmem [resolvable:$true] %s378
          %381 = dma.vmem_to_smem %s379, 32, [#allocation3], [#allocation5]
        $region16: #{tpu_custom_call.1} parent=11 // pred_fallthru
          _
        // Predicated region
        $region17: #{tpu_custom_call.1} parent=11 // pred_check
          %p382 = pneg %p111
        $region18: #{tpu_custom_call.1} parent=11 // pred_check_branch
          %384 = sbr.rel (%p382) target = $region20
        $region19: #{tpu_custom_call.1} parent=11 // pred_region
          _
        $region20: #{tpu_custom_call.1} parent=11 // pred_fallthru
          _
        // Predicated region
        $region21: #{tpu_custom_call.1} parent=11 // pred_check
          %p385 = pneg %p132
        $region22: #{tpu_custom_call.1} parent=11 // pred_check_branch
          %387 = sbr.rel (%p385) target = $region24
        $region23: #{tpu_custom_call.1} parent=11 // pred_region
          _
        $region24: #{tpu_custom_call.1} parent=11 // pred_fallthru
          _
        // Predicated region
        $region25: #{tpu_custom_call.1} parent=11 // pred_check
          %p388 = pneg %p153
        $region26: #{tpu_custom_call.1} parent=11 // pred_check_branch
          %390 = sbr.rel (%p388) target = $region28
        $region27: #{tpu_custom_call.1} parent=11 // pred_region
          _
        $region28: #{tpu_custom_call.1} parent=11 // pred_fallthru
          _
        // Predicated region
        $region29: #{tpu_custom_call.1} parent=11 // pred_check
          %p391 = pneg %p174
        $region30: #{tpu_custom_call.1} parent=11 // pred_check_branch
          %393 = sbr.rel (%p391) target = $region32
        $region31: #{tpu_custom_call.1} parent=11 // pred_region
          _
        $region32: #{tpu_custom_call.1} parent=11 // pred_fallthru
          _
        // Predicated region
        $region33: #{tpu_custom_call.1} parent=11 // pred_check
          %p394 = pneg %p195
        $region34: #{tpu_custom_call.1} parent=11 // pred_check_branch
          %396 = sbr.rel (%p394) target = $region36
        $region35: #{tpu_custom_call.1} parent=11 // pred_region
          _
        $region36: #{tpu_custom_call.1} parent=11 // pred_fallthru
          _
        // Predicated region
        $region37: #{tpu_custom_call.1} parent=11 // pred_check
          %p397 = pneg %p216
        $region38: #{tpu_custom_call.1} parent=11 // pred_check_branch
          %399 = sbr.rel (%p397) target = $region40
        $region39: #{tpu_custom_call.1} parent=11 // pred_region
          _
        $region40: #{tpu_custom_call.1} parent=11 // pred_fallthru
          _
        // Predicated region
        $region41: #{tpu_custom_call.1} parent=11 // pred_check
          %p400 = pneg %p237
        $region42: #{tpu_custom_call.1} parent=11 // pred_check_branch
          %402 = sbr.rel (%p400) target = $region44
        $region43: #{tpu_custom_call.1} parent=11 // pred_region
          _
        $region44: #{tpu_custom_call.1} parent=11 // pred_fallthru
          _
        // Predicated region
        $region45: #{tpu_custom_call.1} parent=11 // pred_check
          %p403 = pneg %p258
        $region46: #{tpu_custom_call.1} parent=11 // pred_check_branch
          %405 = sbr.rel (%p403) target = $region48
        $region47: #{tpu_custom_call.1} parent=11 // pred_region
          _
        $region48: #{tpu_custom_call.1} parent=11 // pred_fallthru
          _
        // Predicated region
        $region49: #{tpu_custom_call.1} parent=11 // pred_check
          %p406 = pneg %p279
        $region50: #{tpu_custom_call.1} parent=11 // pred_check_branch
          %408 = sbr.rel (%p406) target = $region52
        $region51: #{tpu_custom_call.1} parent=11 // pred_region
          _
        $region52: #{tpu_custom_call.1} parent=11 // pred_fallthru
          _
        // Predicated region
        $region53: #{tpu_custom_call.1} parent=11 // pred_check
          %p409 = pneg %p300
        $region54: #{tpu_custom_call.1} parent=11 // pred_check_branch
          %411 = sbr.rel (%p409) target = $region56
        $region55: #{tpu_custom_call.1} parent=11 // pred_region
          _
        $region56: #{tpu_custom_call.1} parent=11 // pred_fallthru
          _
      $region12: #{tpu_custom_call.1} parent=5 // pred_fallthru
        _
      %p412 = scmp.lt.s32.totalorder %s29, 2
      // Predicated region
      $region57: #{tpu_custom_call.1} parent=5 // pred_check
        %p413 = pneg %p412
      $region58: #{tpu_custom_call.1} parent=5 // pred_check_branch
        %415 = sbr.rel (%p413) target = $region60
      $region59: #{tpu_custom_call.1} parent=5 // pred_region
        // Predicated region
        $region61: #{tpu_custom_call.1} parent=59 // pred_check
          %p416 = pneg %p84
        $region62: #{tpu_custom_call.1} parent=59 // pred_check_branch
          %418 = sbr.rel (%p416) target = $region64
        $region63: #{tpu_custom_call.1} parent=59 // pred_region
          %s419 = smul.u32 2, %s37
          %p420 = scmp.lt.s32.totalorder %s36, 1
          %s421 = scalar_select %p420, %s36, 1
          %p422 = scmp.lt.s32.totalorder %s419, 1
          %s423 = scalar_select %p422, %s419, 1
          %s424 = smul.addr %s421, 4
          %s425 = sadd.s32 %s423, %s424
          %s426 = smul.addr %s425, 4
          %s427 = scalar_lea.vmem %s1, %s426
          %s428 = smul.u32 2, %s37
        $region64: #{tpu_custom_call.1} parent=59 // pred_fallthru
          _
      $region60: #{tpu_custom_call.1} parent=5 // pred_fallthru
        _
      %p429 = scmp.le.s32.totalorder 1, %s29
      %p430 = scmp.lt.s32.totalorder %s29, 3
      %p431 = pnand %p429, %p430
      %p432 = pneg %p431
      // Predicated region
      $region65: #{tpu_custom_call.1} parent=5 // pred_check
        _
      $region66: #{tpu_custom_call.1} parent=5 // pred_check_branch
        %434 = sbr.rel (%p431) target = $region68
      $region67: #{tpu_custom_call.1} parent=5 // pred_region
        %s435 = ssub.s32 %s29, 1
        // Predicated region
        $region69: #{tpu_custom_call.1} parent=67 // pred_check
          %p436 = pneg %p62
        $region70: #{tpu_custom_call.1} parent=67 // pred_check_branch
          %438 = sbr.rel (%p436) target = $region72
        $region71: #{tpu_custom_call.1} parent=67 // pred_region
          %439 = dma.done [#allocation5], 32
        $region72: #{tpu_custom_call.1} parent=67 // pred_fallthru
          _
        %440 = sfence
        %p441 = pneg %p62
        %p442 = pneg %p59
        %s443 = smul.u32 2, %s39
        %p444 = scmp.lt.s32.totalorder %s38, 1
        %s445 = scalar_select %p444, %s38, 1
        %p446 = scmp.lt.s32.totalorder %s443, 1
        %s447 = scalar_select %p446, %s443, 1
        %s448 = smul.addr %s445, 4
        %s449 = sadd.s32 %s447, %s448
        %s450 = smul.addr %s449, 4
        %s451 = scalar_lea.vmem %s1, %s450
        %p452 = pneg %p90
        %p453 = pneg %p87
        %p454 = pneg %p111
        %p455 = pneg %p108
        %p456 = pneg %p132
        %p457 = pneg %p129
        %p458 = pneg %p153
        %p459 = pneg %p150
        %p460 = pneg %p174
        %p461 = pneg %p171
        %p462 = pneg %p195
        %p463 = pneg %p192
        %p464 = pneg %p216
        %p465 = pneg %p213
        %p466 = pneg %p237
        %p467 = pneg %p234
        %p468 = pneg %p258
        %p469 = pneg %p255
        %p470 = pneg %p279
        %p471 = pneg %p276
        %p472 = pneg %p300
        %p473 = pneg %p297
        %p474 = pneg %p328
        %p475 = pneg %p325
        %s476 = sand.u32 %s315, 1
        %s477 = scalar_lea.sflag [#allocation4], %s476
        %s478 = sand.u32 %s315, 1
        %s479 = smul.addr %s478, 2
        %s480 = scalar_lea.vmem [#allocation6], %s479
        %p481 = pneg %p356
        %p482 = pneg %p353
        %s483 = sand.u32 %s343, 1
        %s484 = scalar_lea.sflag [#allocation8], %s483
        %s485 = sand.u32 %s343, 1
        %s486 = smul.addr %s485, 16
        %s487 = scalar_lea.vmem [#allocation7], %s486
        %s488 = smul.u32 2, %s39
        %p489 = scmp.lt.s32.totalorder %s38, 1
        %s490 = scalar_select %p489, %s38, 1
        %p491 = scmp.lt.s32.totalorder %s488, 1
        %s492 = scalar_select %p491, %s488, 1
        %s493 = smul.addr %s490, 4
        %s494 = sadd.s32 %s492, %s493
        %s495 = smul.addr %s494, 4
        %s496 = scalar_lea.vmem %s1, %s495
        %s497 = smul.u32 2, %s39
        %s498 = smul.u32 2, %s39
        %s499 = smul.u32 2, %s39
        %v500 = vld [vmem:[%s496] sm:$0x77]
        %v501 = vld [vmem:[%s2] sm:$0xff]
        %503 = vset.pattern.permute.xlu0 0
        %504 = vperm.xlu0 %503, %v501
        %v505 = vpop.permute.xlu0 %504
        %v508 = vlaneseq
        %v509 = vshrl.u32 %v508, 7
        %v510 = vsub.s32 0, %v509
        %v511 = vrot.slane %v500, %v510
        %v512 = vlaneseq
        %v513 = vshrl.u32 %v512, 7
        %v514 = vsub.s32 4, %v513
        %v515 = vrot.slane %v500, %v514
        %v518 = vlaneseq
        %v519 = vshrl.u32 %v518, 7
        %v520 = vsub.s32 0, %v519
        %v521 = vrot.slane %v511, %v520
        %v522 = vlaneseq
        %v523 = vshrl.u32 %v522, 7
        %v524 = vsub.s32 0, %v523
        %v525 = vrot.slane %v515, %v524
        %v526 = vmul.f32 %v505, %v521
        %v527 = vmul.f32 %v505, %v525
        %528 = vset.pattern.permute.xlu0 1
        %529 = vperm.xlu0 %528, %v501
        %v530 = vpop.permute.xlu0 %529
        %v532 = vlaneseq
        %v533 = vshrl.u32 %v532, 7
        %v534 = vsub.s32 1, %v533
        %v535 = vrot.slane %v500, %v534
        %v536 = vlaneseq
        %v537 = vshrl.u32 %v536, 7
        %v538 = vsub.s32 5, %v537
        %v539 = vrot.slane %v500, %v538
        %v542 = vlaneseq
        %v543 = vshrl.u32 %v542, 7
        %v544 = vsub.s32 1, %v543
        %v545 = vrot.slane %v535, %v544
        %v546 = vlaneseq
        %v547 = vshrl.u32 %v546, 7
        %v548 = vsub.s32 1, %v547
        %v549 = vrot.slane %v539, %v548
        %v550 = vmul.f32 %v530, %v545
        %v551 = vmul.f32 %v530, %v549
        %v552 = vadd.f32 %v526, %v550
        %v553 = vadd.f32 %v527, %v551
        %554 = vset.pattern.permute.xlu0 2
        %555 = vperm.xlu0 %554, %v501
        %v556 = vpop.permute.xlu0 %555
        %v558 = vlaneseq
        %v559 = vshrl.u32 %v558, 7
        %v560 = vsub.s32 2, %v559
        %v561 = vrot.slane %v500, %v560
        %v562 = vlaneseq
        %v563 = vshrl.u32 %v562, 7
        %v564 = vsub.s32 6, %v563
        %v565 = vrot.slane %v500, %v564
        %v568 = vlaneseq
        %v569 = vshrl.u32 %v568, 7
        %v570 = vsub.s32 2, %v569
        %v571 = vrot.slane %v561, %v570
        %v572 = vlaneseq
        %v573 = vshrl.u32 %v572, 7
        %v574 = vsub.s32 2, %v573
        %v575 = vrot.slane %v565, %v574
        %v576 = vmul.f32 %v556, %v571
        %v577 = vmul.f32 %v556, %v575
        %v578 = vadd.f32 %v552, %v576
        %v579 = vadd.f32 %v553, %v577
        %v580 = vld [vmem:[%s3] sm:$0xff]
        %582 = vset.pattern.permute.xlu0 0
        %583 = vperm.xlu0 %582, %v580
        %v584 = vpop.permute.xlu0 %583
        %v586 = vadd.f32 %v578, %v584
        %v587 = vadd.f32 %v579, %v584
        %v588 = vmax.f32 %v586, 0.0
        %v589 = vmax.f32 %v587, 0.0
        %v590 = vld [vmem:[%s4] sm:$0xff]
        %v591 = vld [vmem:[%s4 + $0x8] sm:$0xff]
        %v592 = vld [vmem:[%s5] sm:$0xff]
        %v593 = vld [vmem:[%s5 + $0x8] sm:$0xff]
        %595 = vset.pattern.permute.xlu0 0
        %596 = vperm.xlu0 %595, %v592
        %v597 = vpop.permute.xlu0 %596
        %600 = vset.pattern.permute.xlu0 0
        %601 = vperm.xlu0 %600, %v593
        %v602 = vpop.permute.xlu0 %601
        %vm604 = vcmask 64512
        %v606 = vsel %vm604, %v590, 0
        %v609 = vsel %vm604, %v591, 0
        %611 = vmatprep.subr.mxu0 %v589
        %612 = vmatpush1.msra.mxu0 %v588
        %613 = vmatprep.subr.mxu0 0.0
        %614 = vmatpush1.msra.mxu0 0.0
        %615 = vmatprep.subr.mxu0 0.0
        %616 = vmatpush1.msra.mxu0 0.0
        %617 = vmatprep.subr.mxu0 0.0
        %618 = vmatpush1.msra.mxu0 0.0
        %619 = vmatprep.subr.mxu0 0.0
        %620 = vmatpush1.msra.mxu0 0.0
        %621 = vmatprep.subr.mxu0 0.0
        %622 = vmatpush1.msra.mxu0 0.0
        %623 = vmatprep.subr.mxu0 0.0
        %624 = vmatpush1.msra.mxu0 0.0
        %625 = vmatprep.subr.mxu0 0.0
        %626 = vmatpush1.msra.mxu0 0.0
        %627 = vmatprep.subr.mxu0 0.0
        %628 = vmatpush1.msra.mxu0 0.0
        %629 = vmatprep.subr.mxu0 0.0
        %630 = vmatpush1.msra.mxu0 0.0
        %631 = vmatprep.subr.mxu0 0.0
        %632 = vmatpush1.msra.mxu0 0.0
        %633 = vmatprep.subr.mxu0 0.0
        %634 = vmatpush1.msra.mxu0 0.0
        %635 = vmatprep.subr.mxu0 0.0
        %636 = vmatpush1.msra.mxu0 0.0
        %637 = vmatprep.subr.mxu0 0.0
        %638 = vmatpush1.msra.mxu0 0.0
        %639 = vmatprep.subr.mxu0 0.0
        %640 = vmatpush1.msra.mxu0 0.0
        %641 = vmatprep.subr.mxu0 0.0
        %642 = vmatpush1.msra.mxu0 0.0
        %643 = vmatprep.subr.mxu0 0.0
        %644 = vmatpush1.msra.mxu0 0.0
        %645 = vmatprep.subr.mxu0 0.0
        %646 = vmatpush1.msra.mxu0 0.0
        %647 = vmatprep.subr.mxu0 0.0
        %648 = vmatpush1.msra.mxu0 0.0
        %649 = vmatprep.subr.mxu0 0.0
        %650 = vmatpush1.msra.mxu0 0.0
        %651 = vmatprep.subr.mxu0 0.0
        %652 = vmatpush1.msra.mxu0 0.0
        %653 = vmatprep.subr.mxu0 0.0
        %654 = vmatpush1.msra.mxu0 0.0
        %655 = vmatprep.subr.mxu0 0.0
        %656 = vmatpush1.msra.mxu0 0.0
        %657 = vmatprep.subr.mxu0 0.0
        %658 = vmatpush1.msra.mxu0 0.0
        %659 = vmatprep.subr.mxu0 0.0
        %660 = vmatpush1.msra.mxu0 0.0
        %661 = vmatprep.subr.mxu0 0.0
        %662 = vmatpush1.msra.mxu0 0.0
        %663 = vmatprep.subr.mxu0 0.0
        %664 = vmatpush1.msra.mxu0 0.0
        %665 = vmatprep.subr.mxu0 0.0
        %666 = vmatpush1.msra.mxu0 0.0
        %667 = vmatprep.subr.mxu0 0.0
        %668 = vmatpush1.msra.mxu0 0.0
        %669 = vmatprep.subr.mxu0 0.0
        %670 = vmatpush1.msra.mxu0 0.0
        %671 = vmatprep.subr.mxu0 0.0
        %672 = vmatpush1.msra.mxu0 0.0
        %673 = vmatprep.subr.mxu0 0.0
        %674 = vmatpush1.msra.mxu0 0.0
        %675 = vmatprep.mubr.f32.mxu0 0.0
        %676 = vmatmul.mubr.f32.gmra.mrb[0].mxu0 %v606
        %v677 = vpop.f32.mrb[0].mxu0
        %v678 = vadd.f32 %v597, %v677
        %v679 = vpop.f32.mrb[0].mxu0
        %v680 = vadd.f32 %v597, %v679
        %681 = vmatprep.mubr.f32.mxu0 0.0
        %682 = vmatmul.mubr.f32.gmra.mrb[0].mxu0 %v609
        %v683 = vpop.f32.mrb[0].mxu0
        %v684 = vadd.f32 %v602, %v683
        %v685 = vpop.f32.mrb[0].mxu0
        %v686 = vadd.f32 %v602, %v685
        %687 = vdwg.mxu0
        %v688 = vmax.f32 %v678, 0.0
        %v689 = vmax.f32 %v680, 0.0
        %v690 = vmax.f32 %v684, 0.0
        %v691 = vmax.f32 %v686, 0.0
        %v692 = vld [vmem:[%s6] sm:$0xf]
        %v693 = vld [vmem:[%s7] sm:$0xf]
        %695 = vset.pattern.permute.xlu0 0
        %696 = vperm.xlu0 %695, %v693
        %v697 = vpop.permute.xlu0 %696
        %v700 = vsel %vm604, %v692, 0
        %702 = vmatprep.subr.mxu0 %v589
        %703 = vmatpush1.msra.mxu0 %v588
        %704 = vmatprep.subr.mxu0 0.0
        %705 = vmatpush1.msra.mxu0 0.0
        %706 = vmatprep.subr.mxu0 0.0
        %707 = vmatpush1.msra.mxu0 0.0
        %708 = vmatprep.subr.mxu0 0.0
        %709 = vmatpush1.msra.mxu0 0.0
        %710 = vmatprep.subr.mxu0 0.0
        %711 = vmatpush1.msra.mxu0 0.0
        %712 = vmatprep.subr.mxu0 0.0
        %713 = vmatpush1.msra.mxu0 0.0
        %714 = vmatprep.subr.mxu0 0.0
        %715 = vmatpush1.msra.mxu0 0.0
        %716 = vmatprep.subr.mxu0 0.0
        %717 = vmatpush1.msra.mxu0 0.0
        %718 = vmatprep.subr.mxu0 0.0
        %719 = vmatpush1.msra.mxu0 0.0
        %720 = vmatprep.subr.mxu0 0.0
        %721 = vmatpush1.msra.mxu0 0.0
        %722 = vmatprep.subr.mxu0 0.0
        %723 = vmatpush1.msra.mxu0 0.0
        %724 = vmatprep.subr.mxu0 0.0
        %725 = vmatpush1.msra.mxu0 0.0
        %726 = vmatprep.subr.mxu0 0.0
        %727 = vmatpush1.msra.mxu0 0.0
        %728 = vmatprep.subr.mxu0 0.0
        %729 = vmatpush1.msra.mxu0 0.0
        %730 = vmatprep.subr.mxu0 0.0
        %731 = vmatpush1.msra.mxu0 0.0
        %732 = vmatprep.subr.mxu0 0.0
        %733 = vmatpush1.msra.mxu0 0.0
        %734 = vmatprep.subr.mxu0 0.0
        %735 = vmatpush1.msra.mxu0 0.0
        %736 = vmatprep.subr.mxu0 0.0
        %737 = vmatpush1.msra.mxu0 0.0
        %738 = vmatprep.subr.mxu0 0.0
        %739 = vmatpush1.msra.mxu0 0.0
        %740 = vmatprep.subr.mxu0 0.0
        %741 = vmatpush1.msra.mxu0 0.0
        %742 = vmatprep.subr.mxu0 0.0
        %743 = vmatpush1.msra.mxu0 0.0
        %744 = vmatprep.subr.mxu0 0.0
        %745 = vmatpush1.msra.mxu0 0.0
        %746 = vmatprep.subr.mxu0 0.0
        %747 = vmatpush1.msra.mxu0 0.0
        %748 = vmatprep.subr.mxu0 0.0
        %749 = vmatpush1.msra.mxu0 0.0
        %750 = vmatprep.subr.mxu0 0.0
        %751 = vmatpush1.msra.mxu0 0.0
        %752 = vmatprep.subr.mxu0 0.0
        %753 = vmatpush1.msra.mxu0 0.0
        %754 = vmatprep.subr.mxu0 0.0
        %755 = vmatpush1.msra.mxu0 0.0
        %756 = vmatprep.subr.mxu0 0.0
        %757 = vmatpush1.msra.mxu0 0.0
        %758 = vmatprep.subr.mxu0 0.0
        %759 = vmatpush1.msra.mxu0 0.0
        %760 = vmatprep.subr.mxu0 0.0
        %761 = vmatpush1.msra.mxu0 0.0
        %762 = vmatprep.subr.mxu0 0.0
        %763 = vmatpush1.msra.mxu0 0.0
        %764 = vmatprep.subr.mxu0 0.0
        %765 = vmatpush1.msra.mxu0 0.0
        %766 = vmatprep.mubr.f32.mxu0 0.0
        %767 = vmatmul.mubr.f32.gmra.mrb[0].mxu0 %v700
        %v768 = vpop.f32.mrb[0].mxu0
        %v769 = vadd.f32 %v697, %v768
        %v770 = vpop.f32.mrb[0].mxu0
        %v771 = vadd.f32 %v697, %v770
        %772 = vdwg.mxu0
        %v775 = vrot.slane %v769, 1
        %v776 = vrot.slane %v771, 1
        %v779 = vmax.f32 %v769, %v775
        %v780 = vmax.f32 %v771, %v776
        %v781 = vrot.slane %v769, 2
        %v782 = vrot.slane %v771, 2
        %v785 = vmax.f32 %v779, %v781
        %v786 = vmax.f32 %v780, %v782
        %v787 = vrot.slane %v769, 3
        %v788 = vrot.slane %v771, 3
        %v791 = vmax.f32 %v785, %v787
        %v792 = vmax.f32 %v786, %v788
        %v793 = vlaneseq
        %v794 = vshrl.u32 %v793, 7
        %v795 = vsub.s32 0, %v794
        %v796 = vrot.slane %v791, %v795
        %v797 = vlaneseq
        %v798 = vshrl.u32 %v797, 7
        %v799 = vsub.s32 0, %v798
        %v800 = vrot.slane %v792, %v799
        %v801 = vsub.f32 %v769, %v796
        %v802 = vsub.f32 %v771, %v800
        %v803 = vmul.f32 %v801, 1.442695
        %v804 = vpow.pop %v803
        %v805 = vmul.f32 %v802, 1.442695
        %v806 = vpow.pop %v805
        %v809 = vrot.slane %v804, 1
        %v810 = vrot.slane %v806, 1
        %v813 = vadd.f32 %v804, %v809
        %v814 = vadd.f32 %v806, %v810
        %v815 = vrot.slane %v804, 2
        %v816 = vrot.slane %v806, 2
        %v819 = vadd.f32 %v813, %v815
        %v820 = vadd.f32 %v814, %v816
        %v821 = vrot.slane %v804, 3
        %v822 = vrot.slane %v806, 3
        %v825 = vadd.f32 %v819, %v821
        %v826 = vadd.f32 %v820, %v822
        %v827 = vlaneseq
        %v828 = vshrl.u32 %v827, 7
        %v829 = vsub.s32 0, %v828
        %v830 = vrot.slane %v825, %v829
        %v831 = vlaneseq
        %v832 = vshrl.u32 %v831, 7
        %v833 = vsub.s32 0, %v832
        %v834 = vrot.slane %v826, %v833
        %v835 = vrcp.pop %v830
        %v836 = vmul.f32 %v804, %v835
        %v837 = vrcp.pop %v834
        %v838 = vmul.f32 %v806, %v837
        %v841 = vcombine.low %v836, %v838
        %843 = vst [vmem:[%s487] sm:$0xff] %v841
        %s844 = smul.u32 %s38, 128
        %s845 = sld [smem:[#allocation3 + %s844]]
        %v846 = vstv %s845
        %v847 = vmul.f32 %v846, %v688
        %v848 = vmul.f32 %v846, %v689
        %v849 = vmul.f32 %v846, %v690
        %v850 = vmul.f32 %v846, %v691
        %v851 = vadd.f32 %v847, 0.0
        %v852 = vadd.f32 %v848, 0.0
        %v853 = vadd.f32 %v849, 0.0
        %v854 = vadd.f32 %v850, 0.0
        %s855 = scalar_lea.vmem %s496, 8
        %v856 = vld [vmem:[%s855] sm:$0x77]
        %v857 = vld [vmem:[%s2] sm:$0xff]
        %859 = vset.pattern.permute.xlu0 0
        %860 = vperm.xlu0 %859, %v857
        %v861 = vpop.permute.xlu0 %860
        %v864 = vlaneseq
        %v865 = vshrl.u32 %v864, 7
        %v866 = vsub.s32 0, %v865
        %v867 = vrot.slane %v856, %v866
        %v868 = vlaneseq
        %v869 = vshrl.u32 %v868, 7
        %v870 = vsub.s32 4, %v869
        %v871 = vrot.slane %v856, %v870
        %v874 = vlaneseq
        %v875 = vshrl.u32 %v874, 7
        %v876 = vsub.s32 0, %v875
        %v877 = vrot.slane %v867, %v876
        %v878 = vlaneseq
        %v879 = vshrl.u32 %v878, 7
        %v880 = vsub.s32 0, %v879
        %v881 = vrot.slane %v871, %v880
        %v882 = vmul.f32 %v861, %v877
        %v883 = vmul.f32 %v861, %v881
        %884 = vset.pattern.permute.xlu0 1
        %885 = vperm.xlu0 %884, %v857
        %v886 = vpop.permute.xlu0 %885
        %v888 = vlaneseq
        %v889 = vshrl.u32 %v888, 7
        %v890 = vsub.s32 1, %v889
        %v891 = vrot.slane %v856, %v890
        %v892 = vlaneseq
        %v893 = vshrl.u32 %v892, 7
        %v894 = vsub.s32 5, %v893
        %v895 = vrot.slane %v856, %v894
        %v898 = vlaneseq
        %v899 = vshrl.u32 %v898, 7
        %v900 = vsub.s32 1, %v899
        %v901 = vrot.slane %v891, %v900
        %v902 = vlaneseq
        %v903 = vshrl.u32 %v902, 7
        %v904 = vsub.s32 1, %v903
        %v905 = vrot.slane %v895, %v904
        %v906 = vmul.f32 %v886, %v901
        %v907 = vmul.f32 %v886, %v905
        %v908 = vadd.f32 %v882, %v906
        %v909 = vadd.f32 %v883, %v907
        %910 = vset.pattern.permute.xlu0 2
        %911 = vperm.xlu0 %910, %v857
        %v912 = vpop.permute.xlu0 %911
        %v914 = vlaneseq
        %v915 = vshrl.u32 %v914, 7
        %v916 = vsub.s32 2, %v915
        %v917 = vrot.slane %v856, %v916
        %v918 = vlaneseq
        %v919 = vshrl.u32 %v918, 7
        %v920 = vsub.s32 6, %v919
        %v921 = vrot.slane %v856, %v920
        %v924 = vlaneseq
        %v925 = vshrl.u32 %v924, 7
        %v926 = vsub.s32 2, %v925
        %v927 = vrot.slane %v917, %v926
        %v928 = vlaneseq
        %v929 = vshrl.u32 %v928, 7
        %v930 = vsub.s32 2, %v929
        %v931 = vrot.slane %v921, %v930
        %v932 = vmul.f32 %v912, %v927
        %v933 = vmul.f32 %v912, %v931
        %v934 = vadd.f32 %v908, %v932
        %v935 = vadd.f32 %v909, %v933
        %v936 = vld [vmem:[%s3] sm:$0xff]
        %938 = vset.pattern.permute.xlu0 0
        %939 = vperm.xlu0 %938, %v936
        %v940 = vpop.permute.xlu0 %939
        %v942 = vadd.f32 %v934, %v940
        %v943 = vadd.f32 %v935, %v940
        %v944 = vmax.f32 %v942, 0.0
        %v945 = vmax.f32 %v943, 0.0
        %v946 = vld [vmem:[%s4] sm:$0xff]
        %v947 = vld [vmem:[%s4 + $0x8] sm:$0xff]
        %v948 = vld [vmem:[%s5] sm:$0xff]
        %v949 = vld [vmem:[%s5 + $0x8] sm:$0xff]
        %951 = vset.pattern.permute.xlu0 0
        %952 = vperm.xlu0 %951, %v948
        %v953 = vpop.permute.xlu0 %952
        %956 = vset.pattern.permute.xlu0 0
        %957 = vperm.xlu0 %956, %v949
        %v958 = vpop.permute.xlu0 %957
        %v961 = vsel %vm604, %v946, 0
        %v964 = vsel %vm604, %v947, 0
        %966 = vmatprep.subr.mxu0 %v945
        %967 = vmatpush1.msra.mxu0 %v944
        %968 = vmatprep.subr.mxu0 0.0
        %969 = vmatpush1.msra.mxu0 0.0
        %970 = vmatprep.subr.mxu0 0.0
        %971 = vmatpush1.msra.mxu0 0.0
        %972 = vmatprep.subr.mxu0 0.0
        %973 = vmatpush1.msra.mxu0 0.0
        %974 = vmatprep.subr.mxu0 0.0
        %975 = vmatpush1.msra.mxu0 0.0
        %976 = vmatprep.subr.mxu0 0.0
        %977 = vmatpush1.msra.mxu0 0.0
        %978 = vmatprep.subr.mxu0 0.0
        %979 = vmatpush1.msra.mxu0 0.0
        %980 = vmatprep.subr.mxu0 0.0
        %981 = vmatpush1.msra.mxu0 0.0
        %982 = vmatprep.subr.mxu0 0.0
        %983 = vmatpush1.msra.mxu0 0.0
        %984 = vmatprep.subr.mxu0 0.0
        %985 = vmatpush1.msra.mxu0 0.0
        %986 = vmatprep.subr.mxu0 0.0
        %987 = vmatpush1.msra.mxu0 0.0
        %988 = vmatprep.subr.mxu0 0.0
        %989 = vmatpush1.msra.mxu0 0.0
        %990 = vmatprep.subr.mxu0 0.0
        %991 = vmatpush1.msra.mxu0 0.0
        %992 = vmatprep.subr.mxu0 0.0
        %993 = vmatpush1.msra.mxu0 0.0
        %994 = vmatprep.subr.mxu0 0.0
        %995 = vmatpush1.msra.mxu0 0.0
        %996 = vmatprep.subr.mxu0 0.0
        %997 = vmatpush1.msra.mxu0 0.0
        %998 = vmatprep.subr.mxu0 0.0
        %999 = vmatpush1.msra.mxu0 0.0
        %1000 = vmatprep.subr.mxu0 0.0
        %1001 = vmatpush1.msra.mxu0 0.0
        %1002 = vmatprep.subr.mxu0 0.0
        %1003 = vmatpush1.msra.mxu0 0.0
        %1004 = vmatprep.subr.mxu0 0.0
        %1005 = vmatpush1.msra.mxu0 0.0
        %1006 = vmatprep.subr.mxu0 0.0
        %1007 = vmatpush1.msra.mxu0 0.0
        %1008 = vmatprep.subr.mxu0 0.0
        %1009 = vmatpush1.msra.mxu0 0.0
        %1010 = vmatprep.subr.mxu0 0.0
        %1011 = vmatpush1.msra.mxu0 0.0
        %1012 = vmatprep.subr.mxu0 0.0
        %1013 = vmatpush1.msra.mxu0 0.0
        %1014 = vmatprep.subr.mxu0 0.0
        %1015 = vmatpush1.msra.mxu0 0.0
        %1016 = vmatprep.subr.mxu0 0.0
        %1017 = vmatpush1.msra.mxu0 0.0
        %1018 = vmatprep.subr.mxu0 0.0
        %1019 = vmatpush1.msra.mxu0 0.0
        %1020 = vmatprep.subr.mxu0 0.0
        %1021 = vmatpush1.msra.mxu0 0.0
        %1022 = vmatprep.subr.mxu0 0.0
        %1023 = vmatpush1.msra.mxu0 0.0
        %1024 = vmatprep.subr.mxu0 0.0
        %1025 = vmatpush1.msra.mxu0 0.0
        %1026 = vmatprep.subr.mxu0 0.0
        %1027 = vmatpush1.msra.mxu0 0.0
        %1028 = vmatprep.subr.mxu0 0.0
        %1029 = vmatpush1.msra.mxu0 0.0
        %1030 = vmatprep.mubr.f32.mxu0 0.0
        %1031 = vmatmul.mubr.f32.gmra.mrb[0].mxu0 %v961
        %v1032 = vpop.f32.mrb[0].mxu0
        %v1033 = vadd.f32 %v953, %v1032
        %v1034 = vpop.f32.mrb[0].mxu0
        %v1035 = vadd.f32 %v953, %v1034
        %1036 = vmatprep.mubr.f32.mxu0 0.0
        %1037 = vmatmul.mubr.f32.gmra.mrb[0].mxu0 %v964
        %v1038 = vpop.f32.mrb[0].mxu0
        %v1039 = vadd.f32 %v958, %v1038
        %v1040 = vpop.f32.mrb[0].mxu0
        %v1041 = vadd.f32 %v958, %v1040
        %1042 = vdwg.mxu0
        %v1043 = vmax.f32 %v1033, 0.0
        %v1044 = vmax.f32 %v1035, 0.0
        %v1045 = vmax.f32 %v1039, 0.0
        %v1046 = vmax.f32 %v1041, 0.0
        %v1047 = vld [vmem:[%s6] sm:$0xf]
        %v1048 = vld [vmem:[%s7] sm:$0xf]
        %1050 = vset.pattern.permute.xlu0 0
        %1051 = vperm.xlu0 %1050, %v1048
        %v1052 = vpop.permute.xlu0 %1051
        %v1055 = vsel %vm604, %v1047, 0
        %1057 = vmatprep.subr.mxu0 %v945
        %1058 = vmatpush1.msra.mxu0 %v944
        %1059 = vmatprep.subr.mxu0 0.0
        %1060 = vmatpush1.msra.mxu0 0.0
        %1061 = vmatprep.subr.mxu0 0.0
        %1062 = vmatpush1.msra.mxu0 0.0
        %1063 = vmatprep.subr.mxu0 0.0
        %1064 = vmatpush1.msra.mxu0 0.0
        %1065 = vmatprep.subr.mxu0 0.0
        %1066 = vmatpush1.msra.mxu0 0.0
        %1067 = vmatprep.subr.mxu0 0.0
        %1068 = vmatpush1.msra.mxu0 0.0
        %1069 = vmatprep.subr.mxu0 0.0
        %1070 = vmatpush1.msra.mxu0 0.0
        %1071 = vmatprep.subr.mxu0 0.0
        %1072 = vmatpush1.msra.mxu0 0.0
        %1073 = vmatprep.subr.mxu0 0.0
        %1074 = vmatpush1.msra.mxu0 0.0
        %1075 = vmatprep.subr.mxu0 0.0
        %1076 = vmatpush1.msra.mxu0 0.0
        %1077 = vmatprep.subr.mxu0 0.0
        %1078 = vmatpush1.msra.mxu0 0.0
        %1079 = vmatprep.subr.mxu0 0.0
        %1080 = vmatpush1.msra.mxu0 0.0
        %1081 = vmatprep.subr.mxu0 0.0
        %1082 = vmatpush1.msra.mxu0 0.0
        %1083 = vmatprep.subr.mxu0 0.0
        %1084 = vmatpush1.msra.mxu0 0.0
        %1085 = vmatprep.subr.mxu0 0.0
        %1086 = vmatpush1.msra.mxu0 0.0
        %1087 = vmatprep.subr.mxu0 0.0
        %1088 = vmatpush1.msra.mxu0 0.0
        %1089 = vmatprep.subr.mxu0 0.0
        %1090 = vmatpush1.msra.mxu0 0.0
        %1091 = vmatprep.subr.mxu0 0.0
        %1092 = vmatpush1.msra.mxu0 0.0
        %1093 = vmatprep.subr.mxu0 0.0
        %1094 = vmatpush1.msra.mxu0 0.0
        %1095 = vmatprep.subr.mxu0 0.0
        %1096 = vmatpush1.msra.mxu0 0.0
        %1097 = vmatprep.subr.mxu0 0.0
        %1098 = vmatpush1.msra.mxu0 0.0
        %1099 = vmatprep.subr.mxu0 0.0
        %1100 = vmatpush1.msra.mxu0 0.0
        %1101 = vmatprep.subr.mxu0 0.0
        %1102 = vmatpush1.msra.mxu0 0.0
        %1103 = vmatprep.subr.mxu0 0.0
        %1104 = vmatpush1.msra.mxu0 0.0
        %1105 = vmatprep.subr.mxu0 0.0
        %1106 = vmatpush1.msra.mxu0 0.0
        %1107 = vmatprep.subr.mxu0 0.0
        %1108 = vmatpush1.msra.mxu0 0.0
        %1109 = vmatprep.subr.mxu0 0.0
        %1110 = vmatpush1.msra.mxu0 0.0
        %1111 = vmatprep.subr.mxu0 0.0
        %1112 = vmatpush1.msra.mxu0 0.0
        %1113 = vmatprep.subr.mxu0 0.0
        %1114 = vmatpush1.msra.mxu0 0.0
        %1115 = vmatprep.subr.mxu0 0.0
        %1116 = vmatpush1.msra.mxu0 0.0
        %1117 = vmatprep.subr.mxu0 0.0
        %1118 = vmatpush1.msra.mxu0 0.0
        %1119 = vmatprep.subr.mxu0 0.0
        %1120 = vmatpush1.msra.mxu0 0.0
        %1121 = vmatprep.mubr.f32.mxu0 0.0
        %1122 = vmatmul.mubr.f32.gmra.mrb[0].mxu0 %v1055
        %v1123 = vpop.f32.mrb[0].mxu0
        %v1124 = vadd.f32 %v1052, %v1123
        %v1125 = vpop.f32.mrb[0].mxu0
        %v1126 = vadd.f32 %v1052, %v1125
        %1127 = vdwg.mxu0
        %v1130 = vrot.slane %v1124, 1
        %v1131 = vrot.slane %v1126, 1
        %v1134 = vmax.f32 %v1124, %v1130
        %v1135 = vmax.f32 %v1126, %v1131
        %v1136 = vrot.slane %v1124, 2
        %v1137 = vrot.slane %v1126, 2
        %v1140 = vmax.f32 %v1134, %v1136
        %v1141 = vmax.f32 %v1135, %v1137
        %v1142 = vrot.slane %v1124, 3
        %v1143 = vrot.slane %v1126, 3
        %v1146 = vmax.f32 %v1140, %v1142
        %v1147 = vmax.f32 %v1141, %v1143
        %v1148 = vlaneseq
        %v1149 = vshrl.u32 %v1148, 7
        %v1150 = vsub.s32 0, %v1149
        %v1151 = vrot.slane %v1146, %v1150
        %v1152 = vlaneseq
        %v1153 = vshrl.u32 %v1152, 7
        %v1154 = vsub.s32 0, %v1153
        %v1155 = vrot.slane %v1147, %v1154
        %v1156 = vsub.f32 %v1124, %v1151
        %v1157 = vsub.f32 %v1126, %v1155
        %v1158 = vmul.f32 %v1156, 1.442695
        %v1159 = vpow.pop %v1158
        %v1160 = vmul.f32 %v1157, 1.442695
        %v1161 = vpow.pop %v1160
        %v1164 = vrot.slane %v1159, 1
        %v1165 = vrot.slane %v1161, 1
        %v1168 = vadd.f32 %v1159, %v1164
        %v1169 = vadd.f32 %v1161, %v1165
        %v1170 = vrot.slane %v1159, 2
        %v1171 = vrot.slane %v1161, 2
        %v1174 = vadd.f32 %v1168, %v1170
        %v1175 = vadd.f32 %v1169, %v1171
        %v1176 = vrot.slane %v1159, 3
        %v1177 = vrot.slane %v1161, 3
        %v1180 = vadd.f32 %v1174, %v1176
        %v1181 = vadd.f32 %v1175, %v1177
        %v1182 = vlaneseq
        %v1183 = vshrl.u32 %v1182, 7
        %v1184 = vsub.s32 0, %v1183
        %v1185 = vrot.slane %v1180, %v1184
        %v1186 = vlaneseq
        %v1187 = vshrl.u32 %v1186, 7
        %v1188 = vsub.s32 0, %v1187
        %v1189 = vrot.slane %v1181, %v1188
        %v1190 = vrcp.pop %v1185
        %v1191 = vmul.f32 %v1159, %v1190
        %v1192 = vrcp.pop %v1189
        %v1193 = vmul.f32 %v1161, %v1192
        %v1196 = vcombine.low %v1191, %v1193
        %s1198 = scalar_lea.vmem %s487, 8 [#allocation7]
        %1199 = vst [vmem:[%s1198] sm:$0xff] %v1196
        %s1200 = sadd.s32 %s844, 1
        %s1201 = sld [smem:[#allocation3 + %s1200]]
        %v1202 = vstv %s1201
        %v1203 = vmul.f32 %v1202, %v1043
        %v1204 = vmul.f32 %v1202, %v1044
        %v1205 = vmul.f32 %v1202, %v1045
        %v1206 = vmul.f32 %v1202, %v1046
        %v1207 = vadd.f32 %v851, %v1203
        %v1208 = vadd.f32 %v852, %v1204
        %v1209 = vadd.f32 %v853, %v1205
        %v1210 = vadd.f32 %v854, %v1206
        %v1211 = vld [vmem:[%s8] sm:$0xff]
        %v1212 = vld [vmem:[%s8 + $0x8] sm:$0xff]
        %v1213 = vld [vmem:[%s9] sm:$0xff]
        %v1214 = vld [vmem:[%s9 + $0x8] sm:$0xff]
        %1216 = vset.pattern.permute.xlu0 0
        %1217 = vperm.xlu0 %1216, %v1213
        %v1218 = vpop.permute.xlu0 %1217
        %1221 = vset.pattern.permute.xlu0 0
        %1222 = vperm.xlu0 %1221, %v1214
        %v1223 = vpop.permute.xlu0 %1222
        %vm1225 = vcmask 130048
        %v1227 = vsel %vm1225, %v1211, 0
        %v1230 = vsel %vm1225, %v1212, 0
        %1232 = vmatprep.subr.mxu0 %v1208
        %1233 = vmatpush1.msra.mxu0 %v1207
        %1234 = vmatprep.subr.mxu0 %v1210
        %1235 = vmatpush1.msra.mxu0 %v1209
        %1236 = vmatprep.subr.mxu0 0.0
        %1237 = vmatpush1.msra.mxu0 0.0
        %1238 = vmatprep.subr.mxu0 0.0
        %1239 = vmatpush1.msra.mxu0 0.0
        %1240 = vmatprep.subr.mxu0 0.0
        %1241 = vmatpush1.msra.mxu0 0.0
        %1242 = vmatprep.subr.mxu0 0.0
        %1243 = vmatpush1.msra.mxu0 0.0
        %1244 = vmatprep.subr.mxu0 0.0
        %1245 = vmatpush1.msra.mxu0 0.0
        %1246 = vmatprep.subr.mxu0 0.0
        %1247 = vmatpush1.msra.mxu0 0.0
        %1248 = vmatprep.subr.mxu0 0.0
        %1249 = vmatpush1.msra.mxu0 0.0
        %1250 = vmatprep.subr.mxu0 0.0
        %1251 = vmatpush1.msra.mxu0 0.0
        %1252 = vmatprep.subr.mxu0 0.0
        %1253 = vmatpush1.msra.mxu0 0.0
        %1254 = vmatprep.subr.mxu0 0.0
        %1255 = vmatpush1.msra.mxu0 0.0
        %1256 = vmatprep.subr.mxu0 0.0
        %1257 = vmatpush1.msra.mxu0 0.0
        %1258 = vmatprep.subr.mxu0 0.0
        %1259 = vmatpush1.msra.mxu0 0.0
        %1260 = vmatprep.subr.mxu0 0.0
        %1261 = vmatpush1.msra.mxu0 0.0
        %1262 = vmatprep.subr.mxu0 0.0
        %1263 = vmatpush1.msra.mxu0 0.0
        %1264 = vmatprep.subr.mxu0 0.0
        %1265 = vmatpush1.msra.mxu0 0.0
        %1266 = vmatprep.subr.mxu0 0.0
        %1267 = vmatpush1.msra.mxu0 0.0
        %1268 = vmatprep.subr.mxu0 0.0
        %1269 = vmatpush1.msra.mxu0 0.0
        %1270 = vmatprep.subr.mxu0 0.0
        %1271 = vmatpush1.msra.mxu0 0.0
        %1272 = vmatprep.subr.mxu0 0.0
        %1273 = vmatpush1.msra.mxu0 0.0
        %1274 = vmatprep.subr.mxu0 0.0
        %1275 = vmatpush1.msra.mxu0 0.0
        %1276 = vmatprep.subr.mxu0 0.0
        %1277 = vmatpush1.msra.mxu0 0.0
        %1278 = vmatprep.subr.mxu0 0.0
        %1279 = vmatpush1.msra.mxu0 0.0
        %1280 = vmatprep.subr.mxu0 0.0
        %1281 = vmatpush1.msra.mxu0 0.0
        %1282 = vmatprep.subr.mxu0 0.0
        %1283 = vmatpush1.msra.mxu0 0.0
        %1284 = vmatprep.subr.mxu0 0.0
        %1285 = vmatpush1.msra.mxu0 0.0
        %1286 = vmatprep.subr.mxu0 0.0
        %1287 = vmatpush1.msra.mxu0 0.0
        %1288 = vmatprep.subr.mxu0 0.0
        %1289 = vmatpush1.msra.mxu0 0.0
        %1290 = vmatprep.subr.mxu0 0.0
        %1291 = vmatpush1.msra.mxu0 0.0
        %1292 = vmatprep.subr.mxu0 0.0
        %1293 = vmatpush1.msra.mxu0 0.0
        %1294 = vmatprep.subr.mxu0 0.0
        %1295 = vmatpush1.msra.mxu0 0.0
        %1296 = vmatprep.mubr.f32.mxu0 0.0
        %1297 = vmatmul.mubr.f32.gmra.mrb[0].mxu0 %v1227
        %v1298 = vpop.f32.mrb[0].mxu0
        %v1299 = vadd.f32 %v1218, %v1298
        %v1300 = vpop.f32.mrb[0].mxu0
        %v1301 = vadd.f32 %v1218, %v1300
        %1302 = vmatprep.mubr.f32.mxu0 0.0
        %1303 = vmatmul.mubr.f32.gmra.mrb[0].mxu0 %v1230
        %v1304 = vpop.f32.mrb[0].mxu0
        %v1305 = vadd.f32 %v1223, %v1304
        %v1306 = vpop.f32.mrb[0].mxu0
        %v1307 = vadd.f32 %v1223, %v1306
        %1308 = vdwg.mxu0
        %v1309 = vld [vmem:[%s10] sm:$0x1]
        %v1310 = vld [vmem:[#allocation2] sm:$0x1]
        %1312 = vset.pattern.permute.xlu0 0
        %1313 = vperm.xlu0 %1312, %v1310
        %v1314 = vpop.permute.xlu0 %1313
        %v1316 = vlaneseq
        %v1317 = vshrl.u32 %v1316, 7
        %v1318 = vsub.s32 0, %v1317
        %v1319 = vrot.slane %v1314, %v1318
        %v1321 = vsel %vm1225, %v1309, 0
        %1323 = vmatprep.subr.mxu0 %v1301
        %1324 = vmatpush1.msra.mxu0 %v1299
        %1325 = vmatprep.subr.mxu0 %v1307
        %1326 = vmatpush1.msra.mxu0 %v1305
        %1327 = vmatprep.subr.mxu0 0.0
        %1328 = vmatpush1.msra.mxu0 0.0
        %1329 = vmatprep.subr.mxu0 0.0
        %1330 = vmatpush1.msra.mxu0 0.0
        %1331 = vmatprep.subr.mxu0 0.0
        %1332 = vmatpush1.msra.mxu0 0.0
        %1333 = vmatprep.subr.mxu0 0.0
        %1334 = vmatpush1.msra.mxu0 0.0
        %1335 = vmatprep.subr.mxu0 0.0
        %1336 = vmatpush1.msra.mxu0 0.0
        %1337 = vmatprep.subr.mxu0 0.0
        %1338 = vmatpush1.msra.mxu0 0.0
        %1339 = vmatprep.subr.mxu0 0.0
        %1340 = vmatpush1.msra.mxu0 0.0
        %1341 = vmatprep.subr.mxu0 0.0
        %1342 = vmatpush1.msra.mxu0 0.0
        %1343 = vmatprep.subr.mxu0 0.0
        %1344 = vmatpush1.msra.mxu0 0.0
        %1345 = vmatprep.subr.mxu0 0.0
        %1346 = vmatpush1.msra.mxu0 0.0
        %1347 = vmatprep.subr.mxu0 0.0
        %1348 = vmatpush1.msra.mxu0 0.0
        %1349 = vmatprep.subr.mxu0 0.0
        %1350 = vmatpush1.msra.mxu0 0.0
        %1351 = vmatprep.subr.mxu0 0.0
        %1352 = vmatpush1.msra.mxu0 0.0
        %1353 = vmatprep.subr.mxu0 0.0
        %1354 = vmatpush1.msra.mxu0 0.0
        %1355 = vmatprep.subr.mxu0 0.0
        %1356 = vmatpush1.msra.mxu0 0.0
        %1357 = vmatprep.subr.mxu0 0.0
        %1358 = vmatpush1.msra.mxu0 0.0
        %1359 = vmatprep.subr.mxu0 0.0
        %1360 = vmatpush1.msra.mxu0 0.0
        %1361 = vmatprep.subr.mxu0 0.0
        %1362 = vmatpush1.msra.mxu0 0.0
        %1363 = vmatprep.subr.mxu0 0.0
        %1364 = vmatpush1.msra.mxu0 0.0
        %1365 = vmatprep.subr.mxu0 0.0
        %1366 = vmatpush1.msra.mxu0 0.0
        %1367 = vmatprep.subr.mxu0 0.0
        %1368 = vmatpush1.msra.mxu0 0.0
        %1369 = vmatprep.subr.mxu0 0.0
        %1370 = vmatpush1.msra.mxu0 0.0
        %1371 = vmatprep.subr.mxu0 0.0
        %1372 = vmatpush1.msra.mxu0 0.0
        %1373 = vmatprep.subr.mxu0 0.0
        %1374 = vmatpush1.msra.mxu0 0.0
        %1375 = vmatprep.subr.mxu0 0.0
        %1376 = vmatpush1.msra.mxu0 0.0
        %1377 = vmatprep.subr.mxu0 0.0
        %1378 = vmatpush1.msra.mxu0 0.0
        %1379 = vmatprep.subr.mxu0 0.0
        %1380 = vmatpush1.msra.mxu0 0.0
        %1381 = vmatprep.subr.mxu0 0.0
        %1382 = vmatpush1.msra.mxu0 0.0
        %1383 = vmatprep.subr.mxu0 0.0
        %1384 = vmatpush1.msra.mxu0 0.0
        %1385 = vmatprep.subr.mxu0 0.0
        %1386 = vmatpush1.msra.mxu0 0.0
        %1387 = vmatprep.mubr.f32.mxu0 0.0
        %1388 = vmatmul.mubr.f32.gmra.mrb[0].mxu0 %v1321
        %v1389 = vpop.f32.mrb[0].mxu0
        %v1390 = vadd.f32 %v1319, %v1389
        %v1391 = vpop.f32.mrb[0].mxu0
        %v1392 = vadd.f32 %v1319, %v1391
        %1393 = vdwg.mxu0
        %v1394 = vadd.f32 %v1390, 0.0
        %v1395 = vadd.f32 %v1392, 0.0
        %s1396 = scalar_lea.vmem %s8, 16
        %v1397 = vld [vmem:[%s1396] sm:$0xff]
        %v1398 = vld [vmem:[%s1396 + $0x8] sm:$0xff]
        %s1399 = scalar_lea.vmem %s9, 16
        %v1400 = vld [vmem:[%s1399] sm:$0xff]
        %v1401 = vld [vmem:[%s1399 + $0x8] sm:$0xff]
        %1403 = vset.pattern.permute.xlu0 0
        %1404 = vperm.xlu0 %1403, %v1400
        %v1405 = vpop.permute.xlu0 %1404
        %1408 = vset.pattern.permute.xlu0 0
        %1409 = vperm.xlu0 %1408, %v1401
        %v1410 = vpop.permute.xlu0 %1409
        %v1413 = vsel %vm1225, %v1397, 0
        %v1416 = vsel %vm1225, %v1398, 0
        %1418 = vmatprep.subr.mxu0 %v1208
        %1419 = vmatpush1.msra.mxu0 %v1207
        %1420 = vmatprep.subr.mxu0 %v1210
        %1421 = vmatpush1.msra.mxu0 %v1209
        %1422 = vmatprep.subr.mxu0 0.0
        %1423 = vmatpush1.msra.mxu0 0.0
        %1424 = vmatprep.subr.mxu0 0.0
        %1425 = vmatpush1.msra.mxu0 0.0
        %1426 = vmatprep.subr.mxu0 0.0
        %1427 = vmatpush1.msra.mxu0 0.0
        %1428 = vmatprep.subr.mxu0 0.0
        %1429 = vmatpush1.msra.mxu0 0.0
        %1430 = vmatprep.subr.mxu0 0.0
        %1431 = vmatpush1.msra.mxu0 0.0
        %1432 = vmatprep.subr.mxu0 0.0
        %1433 = vmatpush1.msra.mxu0 0.0
        %1434 = vmatprep.subr.mxu0 0.0
        %1435 = vmatpush1.msra.mxu0 0.0
        %1436 = vmatprep.subr.mxu0 0.0
        %1437 = vmatpush1.msra.mxu0 0.0
        %1438 = vmatprep.subr.mxu0 0.0
        %1439 = vmatpush1.msra.mxu0 0.0
        %1440 = vmatprep.subr.mxu0 0.0
        %1441 = vmatpush1.msra.mxu0 0.0
        %1442 = vmatprep.subr.mxu0 0.0
        %1443 = vmatpush1.msra.mxu0 0.0
        %1444 = vmatprep.subr.mxu0 0.0
        %1445 = vmatpush1.msra.mxu0 0.0
        %1446 = vmatprep.subr.mxu0 0.0
        %1447 = vmatpush1.msra.mxu0 0.0
        %1448 = vmatprep.subr.mxu0 0.0
        %1449 = vmatpush1.msra.mxu0 0.0
        %1450 = vmatprep.subr.mxu0 0.0
        %1451 = vmatpush1.msra.mxu0 0.0
        %1452 = vmatprep.subr.mxu0 0.0
        %1453 = vmatpush1.msra.mxu0 0.0
        %1454 = vmatprep.subr.mxu0 0.0
        %1455 = vmatpush1.msra.mxu0 0.0
        %1456 = vmatprep.subr.mxu0 0.0
        %1457 = vmatpush1.msra.mxu0 0.0
        %1458 = vmatprep.subr.mxu0 0.0
        %1459 = vmatpush1.msra.mxu0 0.0
        %1460 = vmatprep.subr.mxu0 0.0
        %1461 = vmatpush1.msra.mxu0 0.0
        %1462 = vmatprep.subr.mxu0 0.0
        %1463 = vmatpush1.msra.mxu0 0.0
        %1464 = vmatprep.subr.mxu0 0.0
        %1465 = vmatpush1.msra.mxu0 0.0
        %1466 = vmatprep.subr.mxu0 0.0
        %1467 = vmatpush1.msra.mxu0 0.0
        %1468 = vmatprep.subr.mxu0 0.0
        %1469 = vmatpush1.msra.mxu0 0.0
        %1470 = vmatprep.subr.mxu0 0.0
        %1471 = vmatpush1.msra.mxu0 0.0
        %1472 = vmatprep.subr.mxu0 0.0
        %1473 = vmatpush1.msra.mxu0 0.0
        %1474 = vmatprep.subr.mxu0 0.0
        %1475 = vmatpush1.msra.mxu0 0.0
        %1476 = vmatprep.subr.mxu0 0.0
        %1477 = vmatpush1.msra.mxu0 0.0
        %1478 = vmatprep.subr.mxu0 0.0
        %1479 = vmatpush1.msra.mxu0 0.0
        %1480 = vmatprep.subr.mxu0 0.0
        %1481 = vmatpush1.msra.mxu0 0.0
        %1482 = vmatprep.mubr.f32.mxu0 0.0
        %1483 = vmatmul.mubr.f32.gmra.mrb[0].mxu0 %v1413
        %v1484 = vpop.f32.mrb[0].mxu0
        %v1485 = vadd.f32 %v1405, %v1484
        %v1486 = vpop.f32.mrb[0].mxu0
        %v1487 = vadd.f32 %v1405, %v1486
        %1488 = vmatprep.mubr.f32.mxu0 0.0
        %1489 = vmatmul.mubr.f32.gmra.mrb[0].mxu0 %v1416
        %v1490 = vpop.f32.mrb[0].mxu0
        %v1491 = vadd.f32 %v1410, %v1490
        %v1492 = vpop.f32.mrb[0].mxu0
        %v1493 = vadd.f32 %v1410, %v1492
        %1494 = vdwg.mxu0
        %1495 = vmatprep.subr.mxu0 %v1487
        %1496 = vmatpush1.msra.mxu0 %v1485
        %1497 = vmatprep.subr.mxu0 %v1493
        %1498 = vmatpush1.msra.mxu0 %v1491
        %1499 = vmatprep.subr.mxu0 0.0
        %1500 = vmatpush1.msra.mxu0 0.0
        %1501 = vmatprep.subr.mxu0 0.0
        %1502 = vmatpush1.msra.mxu0 0.0
        %1503 = vmatprep.subr.mxu0 0.0
        %1504 = vmatpush1.msra.mxu0 0.0
        %1505 = vmatprep.subr.mxu0 0.0
        %1506 = vmatpush1.msra.mxu0 0.0
        %1507 = vmatprep.subr.mxu0 0.0
        %1508 = vmatpush1.msra.mxu0 0.0
        %1509 = vmatprep.subr.mxu0 0.0
        %1510 = vmatpush1.msra.mxu0 0.0
        %1511 = vmatprep.subr.mxu0 0.0
        %1512 = vmatpush1.msra.mxu0 0.0
        %1513 = vmatprep.subr.mxu0 0.0
        %1514 = vmatpush1.msra.mxu0 0.0
        %1515 = vmatprep.subr.mxu0 0.0
        %1516 = vmatpush1.msra.mxu0 0.0
        %1517 = vmatprep.subr.mxu0 0.0
        %1518 = vmatpush1.msra.mxu0 0.0
        %1519 = vmatprep.subr.mxu0 0.0
        %1520 = vmatpush1.msra.mxu0 0.0
        %1521 = vmatprep.subr.mxu0 0.0
        %1522 = vmatpush1.msra.mxu0 0.0
        %1523 = vmatprep.subr.mxu0 0.0
        %1524 = vmatpush1.msra.mxu0 0.0
        %1525 = vmatprep.subr.mxu0 0.0
        %1526 = vmatpush1.msra.mxu0 0.0
        %1527 = vmatprep.subr.mxu0 0.0
        %1528 = vmatpush1.msra.mxu0 0.0
        %1529 = vmatprep.subr.mxu0 0.0
        %1530 = vmatpush1.msra.mxu0 0.0
        %1531 = vmatprep.subr.mxu0 0.0
        %1532 = vmatpush1.msra.mxu0 0.0
        %1533 = vmatprep.subr.mxu0 0.0
        %1534 = vmatpush1.msra.mxu0 0.0
        %1535 = vmatprep.subr.mxu0 0.0
        %1536 = vmatpush1.msra.mxu0 0.0
        %1537 = vmatprep.subr.mxu0 0.0
        %1538 = vmatpush1.msra.mxu0 0.0
        %1539 = vmatprep.subr.mxu0 0.0
        %1540 = vmatpush1.msra.mxu0 0.0
        %1541 = vmatprep.subr.mxu0 0.0
        %1542 = vmatpush1.msra.mxu0 0.0
        %1543 = vmatprep.subr.mxu0 0.0
        %1544 = vmatpush1.msra.mxu0 0.0
        %1545 = vmatprep.subr.mxu0 0.0
        %1546 = vmatpush1.msra.mxu0 0.0
        %1547 = vmatprep.subr.mxu0 0.0
        %1548 = vmatpush1.msra.mxu0 0.0
        %1549 = vmatprep.subr.mxu0 0.0
        %1550 = vmatpush1.msra.mxu0 0.0
        %1551 = vmatprep.subr.mxu0 0.0
        %1552 = vmatpush1.msra.mxu0 0.0
        %1553 = vmatprep.subr.mxu0 0.0
        %1554 = vmatpush1.msra.mxu0 0.0
        %1555 = vmatprep.subr.mxu0 0.0
        %1556 = vmatpush1.msra.mxu0 0.0
        %1557 = vmatprep.subr.mxu0 0.0
        %1558 = vmatpush1.msra.mxu0 0.0
        %1559 = vmatprep.mubr.f32.mxu0 0.0
        %1560 = vmatmul.mubr.f32.gmra.mrb[0].mxu0 %v1321
        %v1561 = vpop.f32.mrb[0].mxu0
        %v1562 = vadd.f32 %v1319, %v1561
        %v1563 = vpop.f32.mrb[0].mxu0
        %v1564 = vadd.f32 %v1319, %v1563
        %1565 = vdwg.mxu0
        %v1566 = vadd.f32 %v1394, %v1562
        %v1567 = vadd.f32 %v1395, %v1564
        %v1570 = vcombine.low %v1566, %v1567
        %v1572 = vunpack.c.l.s4 1966171168
        %v1573 = vunpack.c.0.s8 %v1572
        %v1574 = vlaneseq
        %v1575 = vshrl.u32 %v1574, 7
        %v1576 = vsub.s32 %v1573, %v1575
        %v1577 = vrot.slane %v1570, %v1576
        %v1579 = vunpack.c.l.s4 1966171168
        %v1580 = vunpack.c.0.s8 %v1579
        %v1581 = vlaneseq
        %v1582 = vshrl.u32 %v1581, 7
        %v1583 = vsub.s32 %v1580, %v1582
        %v1584 = vrot.slane %v1577, %v1583
        %v1586 = vlaneseq
        %vm1587 = vcmp.ge.s32.totalorder %v1586, 0
        %vm1588 = vcmp.lt.s32.totalorder %v1586, 256
        %vm1589 = vmand %vm1587, %vm1588
        %1590 = vst.msk [vmem:[%s480] sm:$0x3] %vm1589, %v1584
        %s1591 = sand.u32 %s315, 1
        %s1592 = scalar_lea.sflag [#allocation4], %s1591
        %s1593 = sand.u32 %s315, 1
        %s1594 = smul.addr %s1593, 2
        %s1595 = scalar_lea.vmem [#allocation6], %s1594
        %s1596 = sand.u32 %s343, 1
        %s1597 = scalar_lea.sflag [#allocation8], %s1596
        %s1598 = sand.u32 %s343, 1
        %s1599 = smul.addr %s1598, 16
        %s1600 = scalar_lea.vmem [#allocation7], %s1599
        // Predicated region
        $region73: #{tpu_custom_call.1} parent=67 // pred_check
          %p1601 = pneg %p325
        $region74: #{tpu_custom_call.1} parent=67 // pred_check_branch
          %1603 = sbr.rel (%p1601) target = $region76
        $region75: #{tpu_custom_call.1} parent=67 // pred_region
          %s1604 = smul.u32 2, %s39
          %s1606 = ssub.s32 32, 32
          %1607 = vsyncadd %s1592, %s1606
          %s1608 = smul.addr %s38, 2
          %s1609 = sadd.s32 %s1604, %s1608
          %s1610 = smul.addr %s1609, 16
          %s1611 = scalar_lea.hbm %s12, %s1610
          %s1613 = sshll.u32 %s1595, 4
          %s1614 = int_to_ptr.vmem [resolvable:$true] %s1613
          %1616 = dma.vmem_to_hbm [thread:$0]  %s1614, 32, %s1611, %s1592
        $region76: #{tpu_custom_call.1} parent=67 // pred_fallthru
          _
        // Predicated region
        $region77: #{tpu_custom_call.1} parent=67 // pred_check
          %p1617 = pneg %p353
        $region78: #{tpu_custom_call.1} parent=67 // pred_check_branch
          %1619 = sbr.rel (%p1617) target = $region80
        $region79: #{tpu_custom_call.1} parent=67 // pred_region
          %s1620 = smul.u32 2, %s39
          %s1622 = ssub.s32 256, 256
          %1623 = vsyncadd %s1597, %s1622
          %s1624 = smul.addr %s38, 4
          %s1625 = sadd.s32 %s1620, %s1624
          %s1626 = smul.addr %s1625, 64
          %s1627 = scalar_lea.hbm %s13, %s1626
          %s1628 = sshll.u32 %s1600, 4
          %s1629 = int_to_ptr.vmem [resolvable:$true] %s1628
          %1634 = dma.vmem_to_hbm [thread:$0]  %s1629, 256, %s1627, %s1597, 128, 128, 8
        $region80: #{tpu_custom_call.1} parent=67 // pred_fallthru
          _
      $region68: #{tpu_custom_call.1} parent=5 // pred_fallthru
        _
      %p1635 = scmp.le.s32.totalorder 2, %s29
      // Predicated region
      $region81: #{tpu_custom_call.1} parent=5 // pred_check
        %p1636 = pneg %p1635
      $region82: #{tpu_custom_call.1} parent=5 // pred_check_branch
        %1638 = sbr.rel (%p1636) target = $region84
      $region83: #{tpu_custom_call.1} parent=5 // pred_region
        %s1639 = ssub.s32 %s29, 2
        // Predicated region
        $region85: #{tpu_custom_call.1} parent=83 // pred_check
          %p1640 = pneg %p331
        $region86: #{tpu_custom_call.1} parent=83 // pred_check_branch
          %1642 = sbr.rel (%p1640) target = $region88
        $region87: #{tpu_custom_call.1} parent=83 // pred_region
          %s1643 = sand.u32 %s316, 1
          %s1644 = scalar_lea.sflag [#allocation4], %s1643
          %s1645 = sand.u32 %s316, 1
          %s1646 = smul.addr %s1645, 2
          %s1647 = scalar_lea.vmem [#allocation6], %s1646
          %1648 = dma.done %s1644, 32
        $region88: #{tpu_custom_call.1} parent=83 // pred_fallthru
          _
        // Predicated region
        $region89: #{tpu_custom_call.1} parent=83 // pred_check
          %p1649 = pneg %p359
        $region90: #{tpu_custom_call.1} parent=83 // pred_check_branch
          %1651 = sbr.rel (%p1649) target = $region92
        $region91: #{tpu_custom_call.1} parent=83 // pred_region
          %s1652 = sand.u32 %s344, 1
          %s1653 = scalar_lea.sflag [#allocation8], %s1652
          %s1654 = sand.u32 %s344, 1
          %s1655 = smul.addr %s1654, 16
          %s1656 = scalar_lea.vmem [#allocation7], %s1655
          %1657 = dma.done %s1653, 256
        $region92: #{tpu_custom_call.1} parent=83 // pred_fallthru
          _
      $region84: #{tpu_custom_call.1} parent=5 // pred_fallthru
        _
    $region6: #{tpu_custom_call.1} parent=1 // loop_footer
      %s33 = sadd.s32 1, %s29
    $region7: #{tpu_custom_call.1} parent=1 // loop_footer_branch
      %28 = sbr.rel target = $region3
    $region8: #{tpu_custom_call.1} parent=1 // loop_exit
      _
    %1658 = vsyncpa [#allocation4], 1
    %s1659 = scalar_lea.sflag [#allocation4], 1
    %1660 = vsyncpa %s1659, 1
    %1661 = vsyncpa [#allocation8], 1
    %s1662 = scalar_lea.sflag [#allocation8], 1
    %1663 = vsyncpa %s1662, 1
    %1664 = vsyncpa [#allocation5], 1
    %s1665 = scalar_lea.sflag [#allocation5], 1
    %1666 = vsyncpa %s1665, 1

</llo_original>
